<compile_context>
chip_gen: v6e
topology: v6e:2x2x1
jax: 0.10.0
libtpu: 0.0.40
codegen_flags: <defaults>
</compile_context>

<pallas_src>
import numpy as np
import jax
import jax.numpy as jnp
from jax.experimental import pallas as pl
from jax.experimental.pallas import tpu as pltpu

EPS = 1e-5
_INV_SQRT2 = 0.7071067811865476
_GELU_C = 0.7978845608028654          # sqrt(2/pi)
_MAX_TILE_PIXELS = 8192               # ~4-16K target; keep small for v7x VMEM


# ---------------------------------------------------------------------------
# elementwise helpers
# ---------------------------------------------------------------------------
def _recip(x):
    # approximate reciprocal on the EUP slot; exact divide as a fallback.
    if hasattr(pl, "reciprocal"):
        return pl.reciprocal(x, approx=True)
    return 1.0 / x


def _sigmoid_k(x):
    return _recip(1.0 + jnp.exp(-x))


def _gelu_k(x):
    # tanh approximation of GELU: 1 EUP transcendental + ~5 VALU ops.
    return 0.5 * x * (1.0 + jnp.tanh(_GELU_C * (x + 0.044715 * x * x * x)))


def _gelu_ref(x):
    # exact (erf) GELU == torch.nn.GELU(approximate='none'), reference only.
    return 0.5 * x * (1.0 + jax.lax.erf(x * _INV_SQRT2))


# ---------------------------------------------------------------------------
# Pallas kernel: one fused GatedFormerBlock, per (image n, row-tile i) step
# ---------------------------------------------------------------------------
def _make_gfb_kernel(has_halo, has_skip_proj, Cin, W, TH):
    M = TH * W
    base = W + 1     # left padding (1 corner cell + up-halo row) in the buffer

    def kernel(*args):
        if has_halo:
            (x_ref, up_ref, dn_ref, dwc_ref, msk_ref,
             a_pw_ref, b_pw_ref, a1_ref, b1_ref, a2_ref, b2_ref,
             out_ref, buf_ref) = args
        else:
            (x_ref, dwc_ref, msk_ref,
             a_pw_ref, b_pw_ref, a1_ref, b1_ref, a2_ref, b2_ref,
             out_ref, buf_ref) = args
            up_ref = dn_ref = None

        dwc = dwc_ref[...]                       # (Cin, 12): 9 taps, s, t, b
        s_dw = dwc[:, 9:10]
        t_dw = dwc[:, 10:11]
        b_dw = dwc[:, 11:12]

        xc = x_ref[...]                          # (Cin, M) raw x (residual)
        xb = xc * s_dw + t_dw                    # BN(x) for the depthwise path

        # Stage BN(x) plus the two 1-row H halos in a per-channel row buffer
        # padded by one cell on each side; every 3x3 tap is then a plain
        # offset load (no roll, no per-tap scratch, no full-tile restores).
        buf_ref[:, base:base + M] = xb
        if has_halo:
            i = pl.program_id(1)
            last = pl.num_programs(1) - 1
            # halo rows arrive as (8,128)-aligned 8-row chunks; the needed row
            # is the last (up) / first (dn) W lanes.  Zero at image borders
            # (== Conv2d zero padding applied to the BN output).
            up = (up_ref[:, 7 * W:8 * W] * s_dw + t_dw) \
                * (i > 0).astype(jnp.float32)
            dn = (dn_ref[:, 0:W] * s_dw + t_dw) \
                * (i < last).astype(jnp.float32)
            zc = jnp.zeros((Cin, 1), jnp.float32)
            buf_ref[:, 0:1] = zc
            buf_ref[:, 1:base] = up
            buf_ref[:, base + M:base + M + W] = dn
            buf_ref[:, base + M + W:base + M + W + 1] = zc
        else:
            zb = jnp.zeros((Cin, base), jnp.float32)
            buf_ref[:, 0:base] = zb
            buf_ref[:, base + M:base + M + base] = zb

        tap = lambda k: dwc[:, k:k + 1]
        ld = lambda dh, dv: buf_ref[:, base + dh * W + dv:
                                    base + dh * W + dv + M]
        # combine the 3 H taps per W offset, then mask the +-1 W columns at
        # the image border (k = 3*dh + dw tap ordering, like Conv2d weights).
        lsum = ld(-1, -1) * tap(0) + ld(0, -1) * tap(3) + ld(1, -1) * tap(6)
        csum = ld(-1, 0) * tap(1) + xb * tap(4) + ld(1, 0) * tap(7)
        rsum = ld(-1, 1) * tap(2) + ld(0, 1) * tap(5) + ld(1, 1) * tap(8)
        mask_l = msk_ref[0:1, :]
        mask_r = msk_ref[1:2, :]
        dw = lsum * mask_l + csum + rsum * mask_r + b_dw

        # GatedConvolutionUnit: g = dwconv(BN(x)) * sigmoid(x @ Wpw' + b') + x
        pw = jnp.dot(a_pw_ref[...], xc,
                     preferred_element_type=jnp.float32) + b_pw_ref[...]
        g = dw * _sigmoid_k(pw) + xc

        # FeedForwardGELU (channel_multiplier=2) with fused skip projection
        s1 = jnp.dot(a1_ref[...], g,
                     preferred_element_type=jnp.float32) + b1_ref[...]
        if has_skip_proj:
            c2 = 2 * Cin
            h = _gelu_k(s1[:c2])
            sk = s1[c2:]
        else:
            h = _gelu_k(s1)
            sk = g
        out_ref[...] = (jnp.dot(a2_ref[...], h,
                                preferred_element_type=jnp.float32)
                        + b2_ref[...] + sk)

    return kernel


def _pick_row_tile(H, W, max_pixels=_MAX_TILE_PIXELS):
    """Row-tile height TH.  Tiled blocks use TH multiple of 8 with TH*W a
    multiple of 128 (so every block on the flattened pixel axis stays
    (8,128)-aligned and H halos can be fetched as 8-row chunks); otherwise the
    whole image is a single tile (no halo operands needed)."""
    if W % 16 == 0 and H % 8 == 0 and H > 8:
        divs = [th for th in range(8, H, 8) if H % th == 0]
        if divs:
            fits = [th for th in divs if th * W <= max_pixels]
            return max(fits) if fits else min(divs)
    return H


def _fold_linear(s, t, w, b):
    """Fold an input-side BN (scale s, shift t) into a 1x1 conv; return the
    transposed weight A (cout, cin) and bias column (cout, 1)."""
    a = (w * s.reshape(-1, 1)).T
    bc = (t.reshape(1, -1) @ w + b.reshape(1, -1)).reshape(-1, 1)
    return a.astype(jnp.float32), bc.astype(jnp.float32)


def gated_former_block(x, p):
    """x: (N, Cin, H, W) f32 NCHW -> (N, Cout, H, W).  One fused pallas_call."""
    N, Cin, H, W = x.shape
    Chid = p["w_f1"].shape[1]
    Cout = p["w_f2"].shape[1]
    has_skip_proj = p["has_skip_proj"]

    TH = _pick_row_tile(H, W)
    n_tiles = H // TH
    has_halo = n_tiles > 1
    M = TH * W

    # ---- fold BN into the 1x1-conv weights, pack depthwise constants -------
    dwc = jnp.concatenate(
        [p["w_dw9"].T,
         p["s_dw"].reshape(-1, 1), p["t_dw"].reshape(-1, 1),
         p["b_dw"].reshape(-1, 1)], axis=1).astype(jnp.float32)   # (Cin, 12)
    a_pw, b_pw = _fold_linear(p["s_pw"], p["t_pw"], p["w_pw"], p["b_pw"])
    a_f1, b_f1 = _fold_linear(p["s_f1"], p["t_f1"], p["w_f1"], p["b_f1"])
    if has_skip_proj:
        a_sk, b_sk = _fold_linear(p["s_sk"], p["t_sk"], p["w_sk"], p["b_sk"])
        a1 = jnp.concatenate([a_f1, a_sk], axis=0)
        b1 = jnp.concatenate([b_f1, b_sk], axis=0)
    else:
        a1, b1 = a_f1, b_f1
    a2, b2 = _fold_linear(p["s_f2"], p["t_f2"], p["w_f2"], p["b_f2"])

    col = jnp.arange(M, dtype=jnp.int32) % W
    masks = jnp.stack([(col != 0), (col != W - 1)],
                      axis=0).astype(jnp.float32)                 # (2, M)

    params = [dwc, masks, a_pw, b_pw, a1, b1, a2, b2]

    # ---- block specs (flattened pixel axis, channels-first) ----------------
    x_flat = x.reshape(N, Cin, H * W)
    x_spec = pl.BlockSpec((None, Cin, M), lambda n, i: (n, 0, i))
    const_spec = lambda a: pl.BlockSpec(a.shape, lambda n, i: (0,) * a.ndim)

    in_specs = [x_spec]
    operands = [x_flat]
    if has_halo:
        q = TH // 8
        last_chunk = H // 8 - 1
        up_spec = pl.BlockSpec(
            (None, Cin, 8 * W), lambda n, i: (n, 0, jnp.maximum(i * q - 1, 0)))
        dn_spec = pl.BlockSpec(
            (None, Cin, 8 * W),
            lambda n, i: (n, 0, jnp.minimum((i + 1) * q, last_chunk)))
        in_specs += [up_spec, dn_spec]
        operands += [x_flat, x_flat]
    in_specs += [const_spec(a) for a in params]
    operands += params

    out_spec = pl.BlockSpec((None, Cout, M), lambda n, i: (n, 0, i))

    # ---- advisory cost + VMEM sizing ----------------------------------------
    npix = N * H * W
    f1_rows = int(a1.shape[0])
    flops = (2 * npix * (Cin * Cin + Cin * f1_rows + Chid * Cout)
             + 30 * npix * Cin)
    trans = 4 * npix * Cin
    bytes_accessed = 4 * (npix * (Cin + Cout)
                          + (N * n_tiles * 2 * 8 * W * Cin if has_halo else 0)
                          + sum(int(np.prod(a.shape)) for a in params))
    est_vmem = 4 * (M * (3 * Cin + 2 * Cout + 6 * max(f1_rows, 2 * Cin))
                    + Cin * (M + 2 * W + 2))
    vmem_limit = None
    if est_vmem > 12 * 1024 * 1024:     # only raise when the default is tight
        vmem_limit = int(min(max(2 * est_vmem, 32 * 1024 * 1024),
                             64 * 1024 * 1024))

    out = pl.pallas_call(
        _make_gfb_kernel(has_halo, has_skip_proj, Cin, W, TH),
        out_shape=jax.ShapeDtypeStruct((N, Cout, H * W), jnp.float32),
        grid=(N, n_tiles),
        in_specs=in_specs,
        out_specs=out_spec,
        scratch_shapes=[pltpu.VMEM((Cin, M + 2 * W + 2), jnp.float32)],
        compiler_params=pltpu.CompilerParams(
            dimension_semantics=("parallel", "parallel"),
            vmem_limit_bytes=vmem_limit),
        cost_estimate=pl.CostEstimate(flops=int(flops),
                                      transcendentals=int(trans),
                                      bytes_accessed=int(bytes_accessed)),
    )(*operands)
    return out.reshape(N, Cout, H, W)


# pure-JAX reference for the block (same math, exact GELU) -- verification
def gated_former_block_ref(x, p):
    N, C, H, W = x.shape
    cvec = lambda a: a.reshape(1, -1, 1, 1)
    mm = lambda a, w: jnp.einsum("nchw,cd->ndhw", a, w)
    xbn = x * cvec(p["s_dw"]) + cvec(p["t_dw"])
    xpad = jnp.pad(xbn, ((0, 0), (0, 0), (1, 1), (1, 1)))
    dw = jnp.zeros_like(x)
    for k in range(9):
        dh, dwi = divmod(k, 3)
        dw = dw + xpad[:, :, dh:dh + H, dwi:dwi + W] * cvec(p["w_dw9"][k])
    dw = dw + cvec(p["b_dw"])
    pw = jax.nn.sigmoid(mm(x * cvec(p["s_pw"]) + cvec(p["t_pw"]), p["w_pw"])
                        + cvec(p["b_pw"]))
    g = dw * pw + x
    h = _gelu_ref(mm(g * cvec(p["s_f1"]) + cvec(p["t_f1"]), p["w_f1"])
                  + cvec(p["b_f1"]))
    ffn = mm(h * cvec(p["s_f2"]) + cvec(p["t_f2"]), p["w_f2"]) + cvec(p["b_f2"])
    if p["has_skip_proj"]:
        sk = mm(g * cvec(p["s_sk"]) + cvec(p["t_sk"]), p["w_sk"]) \
            + cvec(p["b_sk"])
    else:
        sk = g
    return ffn + sk


# ---------------------------------------------------------------------------
# U-Net / LaplacianFilter glue (plain JAX, NCHW like the PyTorch module)
# ---------------------------------------------------------------------------
def avg_pool_2x2(x):
    N, C, H, W = x.shape
    return x.reshape(N, C, H // 2, 2, W // 2, 2).mean(axis=(3, 5))


def max_pool_2x2(x):
    N, C, H, W = x.shape
    return x.reshape(N, C, H // 2, 2, W // 2, 2).max(axis=(3, 5))


def bilinear_resize(x, Ht, Wt):
    """F.interpolate(mode='bilinear', align_corners=False) on NCHW."""
    N, C, H, W = x.shape

    def idx_w(out_size, in_size):
        scale = in_size / out_size
        c = (jnp.arange(out_size, dtype=jnp.float32) + 0.5) * scale - 0.5
        c = jnp.clip(c, 0.0, in_size - 1)
        i0 = jnp.clip(jnp.floor(c).astype(jnp.int32), 0, in_size - 1)
        i1 = jnp.minimum(i0 + 1, in_size - 1)
        w1 = c - i0.astype(jnp.float32)
        return i0, i1, 1.0 - w1, w1

    h0, h1, wh0, wh1 = idx_w(Ht, H)
    w0, w1, ww0, ww1 = idx_w(Wt, W)
    xr = (x[:, :, h0, :] * wh0[None, None, :, None]
          + x[:, :, h1, :] * wh1[None, None, :, None])
    return (xr[:, :, :, w0] * ww0[None, None, None, :]
            + xr[:, :, :, w1] * ww1[None, None, None, :])


def per_pixel_conv3(img, kernel):
    """op_per_pixel_conv (3x3): img (N,C,H,W), kernel (N,9,H,W)."""
    N, C, H, W = img.shape
    pad = jnp.pad(img, ((0, 0), (0, 0), (1, 1), (1, 1)))
    out = jnp.zeros_like(img)
    for k in range(9):
        dh, dw = divmod(k, 3)
        out = out + pad[:, :, dh:dh + H, dw:dw + W] * kernel[:, k:k + 1]
    return out


def laplacian_filter(latent_ka, radiance, hidden_state, prev_level, motionvec,
                     num_ka):
    """LaplacianFilter.forward with predictor=False (NCHW)."""
    ka = latent_ka[:, -num_ka:]
    kern = jax.nn.softmax(ka[:, :9] / 9.0, axis=1)
    alpha_t = jax.nn.sigmoid(ka[:, 9:10] / 9.0)
    if hidden_state is None:
        hidden = jnp.zeros_like(radiance)
    else:
        # TODO(synk): op_warp_tensor (grid_sample warp by motionvec) is not
        # implemented; only empty hidden states are supported.
        raise NotImplementedError("previous-frame hidden-state warp")
    filt = per_pixel_conv3(radiance, kern) * alpha_t + hidden * (1.0 - alpha_t)
    if prev_level is not None:
        alpha_c = jax.nn.sigmoid(ka[:, 10:11] / 9.0)
        delta = prev_level - avg_pool_2x2(filt)
        delta = bilinear_resize(delta, filt.shape[2], filt.shape[3])
        filt = filt + delta * (1.0 - alpha_c)
    return filt


def laplacian_unet_forward(radiance, latent, motionvec, hidden_states, params,
                           block_fn):
    """LaplacianUNet.forward: returns (filtered, decoded_latent, next_hidden)."""
    levels, num_ka = params["levels"], params["num_ka"]
    L = len(levels)
    ds_color, skips = [], []
    for i in range(L):
        ds_color.append(radiance if i == 0 else avg_pool_2x2(ds_color[i - 1]))
        enc_in = latent if i == 0 else max_pool_2x2(skips[i - 1])
        skips.append(block_fn(enc_in, levels[i]["enc"]))

    filtered = None
    decoded = None
    next_hidden = [None] * L
    for i in reversed(range(L)):
        if i == L - 1:
            dec_in = skips[i]
        else:
            up = bilinear_resize(decoded, skips[i].shape[2], skips[i].shape[3])
            # TODO(synk): pass skip/up as two kernel operands with split-K
            #             weights instead of materializing this concat in HBM.
            dec_in = jnp.concatenate([skips[i], up], axis=1)
        decoded = block_fn(dec_in, levels[i]["dec"])
        filtered = laplacian_filter(decoded, ds_color[i], hidden_states[i],
                                    filtered, motionvec, num_ka[i])
        decoded = decoded[:, :decoded.shape[1] - num_ka[i]]
        next_hidden[i] = filtered
    return filtered, decoded, next_hidden


# ---------------------------------------------------------------------------
# deterministic synthetic parameters (BN stored raw; folded per call)
# ---------------------------------------------------------------------------
def _init_bn(key, c):
    k1, k2, k3, k4 = jax.random.split(key, 4)
    gamma = jax.random.uniform(k1, (c,), minval=0.8, maxval=1.2)
    beta = 0.1 * jax.random.normal(k2, (c,))
    rmean = 0.1 * jax.random.normal(k3, (c,))
    rvar = jax.random.uniform(k4, (c,), minval=0.5, maxval=1.5)
    s = gamma / jnp.sqrt(rvar + EPS)
    t = beta - rmean * s
    return (s.reshape(1, c).astype(jnp.float32),
            t.reshape(1, c).astype(jnp.float32))


def _init_conv(key, cin, cout):
    kw, kb = jax.random.split(key)
    w = (jax.random.normal(kw, (cin, cout)) / np.sqrt(cin)).astype(jnp.float32)
    b = (0.05 * jax.random.normal(kb, (1, cout))).astype(jnp.float32)
    return w, b


def init_gfb_params(key, cin, cout):
    ks = jax.random.split(key, 11)
    p = {}
    # GatedConvolutionUnit
    p["s_dw"], p["t_dw"] = _init_bn(ks[0], cin)
    p["w_dw9"] = (jax.random.normal(ks[1], (9, cin)) / 3.0).astype(jnp.float32)
    p["b_dw"] = (0.05 * jax.random.normal(ks[2], (1, cin))).astype(jnp.float32)
    p["s_pw"], p["t_pw"] = _init_bn(ks[3], cin)
    p["w_pw"], p["b_pw"] = _init_conv(ks[4], cin, cin)
    # FeedForwardGELU (channel_multiplier=2, has_skip=True)
    hidden = 2 * cin
    p["s_f1"], p["t_f1"] = _init_bn(ks[5], cin)
    p["w_f1"], p["b_f1"] = _init_conv(ks[6], cin, hidden)
    p["s_f2"], p["t_f2"] = _init_bn(ks[7], hidden)
    p["w_f2"], p["b_f2"] = _init_conv(ks[8], hidden, cout)
    p["has_skip_proj"] = (cin != cout)
    if p["has_skip_proj"]:
        p["s_sk"], p["t_sk"] = _init_bn(ks[9], cin)
        p["w_sk"], p["b_sk"] = _init_conv(ks[10], cin, cout)
    return p


def init_unet_params(key, channels):
    L = len(channels) - 1
    levels, num_ka = [], []
    for j in range(L):
        is_bottleneck = (j == L - 1)
        nka = 10 if is_bottleneck else 11     # LaplacianFilter.num_ka_channels
        num_ka.append(nka)
        ke, kd, key = jax.random.split(key, 3)
        enc = init_gfb_params(ke, channels[j], channels[j + 1])
        dec_cin = channels[j + 1] if is_bottleneck else 2 * channels[j + 1]
        dec = init_gfb_params(kd, dec_cin, channels[j] + nka)
        levels.append({"enc": enc, "dec": dec})
    return {"levels": levels, "num_ka": num_ka}


# ---------------------------------------------------------------------------
if __name__ == "__main__":
    key = jax.random.PRNGKey(0)
    kr, kl, km, kp = jax.random.split(key, 4)

    channels = [4, 8, 16]          # LaplacianUNet(channels)
    N, H, W = 2, 16, 16
    C_RAD = 3                      # RGB radiance

    # the PyTorch module takes NCHW tensors; we keep NCHW end to end.
    radiance = jax.random.normal(kr, (N, C_RAD, H, W), dtype=jnp.float32)
    latent = jax.random.normal(kl, (N, channels[0], H, W), dtype=jnp.float32)
    motionvec = 0.5 * jax.random.normal(km, (N, 2, H, W), dtype=jnp.float32)

    params = init_unet_params(kp, channels)
    hidden_states = [None] * (len(channels) - 1)   # create_empty_hidden_state()

    filt, dec, nxt = laplacian_unet_forward(
        radiance, latent, motionvec, hidden_states, params, gated_former_block)
    filt = jax.block_until_ready(filt)

    filt_r, dec_r, nxt_r = laplacian_unet_forward(
        radiance, latent, motionvec, hidden_states, params,
        gated_former_block_ref)
    jax.block_until_ready(filt_r)

    assert filt.shape == (N, C_RAD, H, W), filt.shape
    assert dec.shape == (N, channels[0], H, W), dec.shape
    assert nxt[0].shape == (N, C_RAD, H, W), nxt[0].shape
    assert nxt[1].shape == (N, C_RAD, H // 2, W // 2), nxt[1].shape

    for got, ref in zip((filt, dec) + tuple(nxt), (filt_r, dec_r) + tuple(nxt_r)):
        err = float(jnp.max(jnp.abs(got - ref)))
        tol = 2e-2 * (1.0 + float(jnp.max(jnp.abs(ref))))
        assert err < tol, f"kernel/reference mismatch: max abs err {err} (tol {tol})"
    print("KERNEL_OK")
</pallas_src>

<mosaic_0001>
module attributes {stable_mosaic.version = 11 : i64} {
  func.func @kernel(%arg0: i32, %arg1: i32, %arg2: memref<1x4x128xf32, #tpu.memory_space<vmem>>, %arg3: memref<1x4x128xf32, #tpu.memory_space<vmem>>, %arg4: memref<1x4x128xf32, #tpu.memory_space<vmem>>, %arg5: memref<4x12xf32, #tpu.memory_space<vmem>>, %arg6: memref<2x128xf32, #tpu.memory_space<vmem>>, %arg7: memref<4x4xf32, #tpu.memory_space<vmem>>, %arg8: memref<4x1xf32, #tpu.memory_space<vmem>>, %arg9: memref<16x4xf32, #tpu.memory_space<vmem>>, %arg10: memref<16x1xf32, #tpu.memory_space<vmem>>, %arg11: memref<8x8xf32, #tpu.memory_space<vmem>>, %arg12: memref<8x1xf32, #tpu.memory_space<vmem>>, %arg13: memref<1x8x128xf32, #tpu.memory_space<vmem>>, %arg14: memref<4x162xf32, #tpu.memory_space<vmem>>) attributes {dimension_semantics = [#tpu.dimension_semantics<parallel>, #tpu.dimension_semantics<parallel>], iteration_bounds = array<i64: 2, 2>, scalar_prefetch = 0 : i64, scratch_operands = 1 : i64, tpu.core_type = #tpu.core_type<tc>, window_params = [{transform_indices = @transform_0, window_bounds = array<i64: 1, 4, 128>}, {transform_indices = @transform_1, window_bounds = array<i64: 1, 4, 128>}, {transform_indices = @transform_2, window_bounds = array<i64: 1, 4, 128>}, {pipeline_mode = #tpu.pipeline_mode<synchronous>, transform_indices = @transform_3, window_bounds = array<i64: 4, 12>}, {pipeline_mode = #tpu.pipeline_mode<synchronous>, transform_indices = @transform_4, window_bounds = array<i64: 2, 128>}, {pipeline_mode = #tpu.pipeline_mode<synchronous>, transform_indices = @transform_5, window_bounds = array<i64: 4, 4>}, {pipeline_mode = #tpu.pipeline_mode<synchronous>, transform_indices = @transform_6, window_bounds = array<i64: 4, 1>}, {pipeline_mode = #tpu.pipeline_mode<synchronous>, transform_indices = @transform_7, window_bounds = array<i64: 16, 4>}, {pipeline_mode = #tpu.pipeline_mode<synchronous>, transform_indices = @transform_8, window_bounds = array<i64: 16, 1>}, {pipeline_mode = #tpu.pipeline_mode<synchronous>, transform_indices = @transform_9, window_bounds = array<i64: 8, 8>}, {pipeline_mode = #tpu.pipeline_mode<synchronous>, transform_indices = @transform_10, window_bounds = array<i64: 8, 1>}, {transform_indices = @transform_11, window_bounds = array<i64: 1, 8, 128>}]} {
    %c0 = arith.constant 0 : index
    %c0_0 = arith.constant 0 : index
    %0 = vector.load %arg5[%c0, %c0_0] : memref<4x12xf32, #tpu.memory_space<vmem>>, vector<4x12xf32>
    %1 = vector.extract_strided_slice %0 {offsets = [0, 9], sizes = [4, 1], strides = [1, 1]} : vector<4x12xf32> to vector<4x1xf32>
    %2 = vector.extract_strided_slice %0 {offsets = [0, 10], sizes = [4, 1], strides = [1, 1]} : vector<4x12xf32> to vector<4x1xf32>
    %3 = vector.extract_strided_slice %0 {offsets = [0, 11], sizes = [4, 1], strides = [1, 1]} : vector<4x12xf32> to vector<4x1xf32>
    %c0_1 = arith.constant 0 : index
    %c0_2 = arith.constant 0 : index
    %c0_3 = arith.constant 0 : index
    %4 = vector.load %arg2[%c0_1, %c0_2, %c0_3] : memref<1x4x128xf32, #tpu.memory_space<vmem>>, vector<1x4x128xf32>
    %5 = vector.shape_cast %4 : vector<1x4x128xf32> to vector<4x128xf32>
    %6 = vector.broadcast %1 : vector<4x1xf32> to vector<4x128xf32>
    %7 = arith.mulf %5, %6 : vector<4x128xf32>
    %8 = vector.broadcast %2 : vector<4x1xf32> to vector<4x128xf32>
    %9 = arith.addf %7, %8 : vector<4x128xf32>
    %c0_4 = arith.constant 0 : index
    %c17 = arith.constant 17 : index
    %10 = vector.load %arg14[%c0_4, %c17] : memref<4x162xf32, #tpu.memory_space<vmem>>, vector<4x128xf32>
    tpu.vector_store %arg14[%c0_4, %c17], %9 {strides = array<i32>} : memref<4x162xf32, #tpu.memory_space<vmem>>, vector<4x128xf32>,
    %c0_5 = arith.constant 0 : index
    %c0_6 = arith.constant 0 : index
    %c112 = arith.constant 112 : index
    %11 = vector.load %arg3[%c0_5, %c0_6, %c112] : memref<1x4x128xf32, #tpu.memory_space<vmem>>, vector<1x4x16xf32>
    %12 = vector.shape_cast %11 : vector<1x4x16xf32> to vector<4x16xf32>
    %13 = vector.broadcast %1 : vector<4x1xf32> to vector<4x16xf32>
    %14 = arith.mulf %12, %13 : vector<4x16xf32>
    %15 = vector.broadcast %2 : vector<4x1xf32> to vector<4x16xf32>
    %16 = arith.addf %14, %15 : vector<4x16xf32>
    %c0_i32 = arith.constant 0 : i32
    %17 = arith.cmpi sgt, %arg1, %c0_i32 : i32
    %18 = arith.extui %17 : i1 to i32
    %19 = arith.sitofp %18 : i32 to f32
    %20 = vector.broadcast %19 : f32 to vector<4x16xf32>
    %21 = arith.mulf %16, %20 : vector<4x16xf32>
    %c0_7 = arith.constant 0 : index
    %c0_8 = arith.constant 0 : index
    %c0_9 = arith.constant 0 : index
    %22 = vector.load %arg4[%c0_7, %c0_8, %c0_9] : memref<1x4x128xf32, #tpu.memory_space<vmem>>, vector<1x4x16xf32>
    %23 = vector.shape_cast %22 : vector<1x4x16xf32> to vector<4x16xf32>
    %24 = vector.broadcast %1 : vector<4x1xf32> to vector<4x16xf32>
    %25 = arith.mulf %23, %24 : vector<4x16xf32>
    %26 = vector.broadcast %2 : vector<4x1xf32> to vector<4x16xf32>
    %27 = arith.addf %25, %26 : vector<4x16xf32>
    %c1_i32 = arith.constant 1 : i32
    %28 = arith.cmpi slt, %arg1, %c1_i32 : i32
    %29 = arith.extui %28 : i1 to i32
    %30 = arith.sitofp %29 : i32 to f32
    %31 = vector.broadcast %30 : f32 to vector<4x16xf32>
    %32 = arith.mulf %27, %31 : vector<4x16xf32>
    %cst = arith.constant 0.000000e+00 : f32
    %33 = vector.broadcast %cst : f32 to vector<4x1xf32>
    %c0_10 = arith.constant 0 : index
    %c0_11 = arith.constant 0 : index
    %34 = vector.load %arg14[%c0_10, %c0_11] : memref<4x162xf32, #tpu.memory_space<vmem>>, vector<4x1xf32>
    tpu.vector_store %arg14[%c0_10, %c0_11], %33 {strides = array<i32>} : memref<4x162xf32, #tpu.memory_space<vmem>>, vector<4x1xf32>,
    %c0_12 = arith.constant 0 : index
    %c1 = arith.constant 1 : index
    %35 = vector.load %arg14[%c0_12, %c1] : memref<4x162xf32, #tpu.memory_space<vmem>>, vector<4x16xf32>
    tpu.vector_store %arg14[%c0_12, %c1], %21 {strides = array<i32>} : memref<4x162xf32, #tpu.memory_space<vmem>>, vector<4x16xf32>,
    %c0_13 = arith.constant 0 : index
    %c145 = arith.constant 145 : index
    %36 = vector.load %arg14[%c0_13, %c145] : memref<4x162xf32, #tpu.memory_space<vmem>>, vector<4x16xf32>
    tpu.vector_store %arg14[%c0_13, %c145], %32 {strides = array<i32>} : memref<4x162xf32, #tpu.memory_space<vmem>>, vector<4x16xf32>,
    %c0_14 = arith.constant 0 : index
    %c161 = arith.constant 161 : index
    %37 = vector.load %arg14[%c0_14, %c161] : memref<4x162xf32, #tpu.memory_space<vmem>>, vector<4x1xf32>
    tpu.vector_store %arg14[%c0_14, %c161], %33 {strides = array<i32>} : memref<4x162xf32, #tpu.memory_space<vmem>>, vector<4x1xf32>,
    %c0_15 = arith.constant 0 : index
    %c0_16 = arith.constant 0 : index
    %38 = vector.load %arg14[%c0_15, %c0_16] : memref<4x162xf32, #tpu.memory_space<vmem>>, vector<4x128xf32>
    %39 = vector.extract_strided_slice %0 {offsets = [0, 0], sizes = [4, 1], strides = [1, 1]} : vector<4x12xf32> to vector<4x1xf32>
    %40 = vector.broadcast %39 : vector<4x1xf32> to vector<4x128xf32>
    %41 = arith.mulf %38, %40 : vector<4x128xf32>
    %c0_17 = arith.constant 0 : index
    %c16 = arith.constant 16 : index
    %42 = vector.load %arg14[%c0_17, %c16] : memref<4x162xf32, #tpu.memory_space<vmem>>, vector<4x128xf32>
    %43 = vector.extract_strided_slice %0 {offsets = [0, 3], sizes = [4, 1], strides = [1, 1]} : vector<4x12xf32> to vector<4x1xf32>
    %44 = vector.broadcast %43 : vector<4x1xf32> to vector<4x128xf32>
    %45 = arith.mulf %42, %44 : vector<4x128xf32>
    %46 = arith.addf %41, %45 : vector<4x128xf32>
    %c0_18 = arith.constant 0 : index
    %c32 = arith.constant 32 : index
    %47 = vector.load %arg14[%c0_18, %c32] : memref<4x162xf32, #tpu.memory_space<vmem>>, vector<4x128xf32>
    %48 = vector.extract_strided_slice %0 {offsets = [0, 6], sizes = [4, 1], strides = [1, 1]} : vector<4x12xf32> to vector<4x1xf32>
    %49 = vector.broadcast %48 : vector<4x1xf32> to vector<4x128xf32>
    %50 = arith.mulf %47, %49 : vector<4x128xf32>
    %51 = arith.addf %46, %50 : vector<4x128xf32>
    %c0_19 = arith.constant 0 : index
    %c1_20 = arith.constant 1 : index
    %52 = vector.load %arg14[%c0_19, %c1_20] : memref<4x162xf32, #tpu.memory_space<vmem>>, vector<4x128xf32>
    %53 = vector.extract_strided_slice %0 {offsets = [0, 1], sizes = [4, 1], strides = [1, 1]} : vector<4x12xf32> to vector<4x1xf32>
    %54 = vector.broadcast %53 : vector<4x1xf32> to vector<4x128xf32>
    %55 = arith.mulf %52, %54 : vector<4x128xf32>
    %56 = vector.extract_strided_slice %0 {offsets = [0, 4], sizes = [4, 1], strides = [1, 1]} : vector<4x12xf32> to vector<4x1xf32>
    %57 = vector.broadcast %56 : vector<4x1xf32> to vector<4x128xf32>
    %58 = arith.mulf %9, %57 : vector<4x128xf32>
    %59 = arith.addf %55, %58 : vector<4x128xf32>
    %c0_21 = arith.constant 0 : index
    %c33 = arith.constant 33 : index
    %60 = vector.load %arg14[%c0_21, %c33] : memref<4x162xf32, #tpu.memory_space<vmem>>, vector<4x128xf32>
    %61 = vector.extract_strided_slice %0 {offsets = [0, 7], sizes = [4, 1], strides = [1, 1]} : vector<4x12xf32> to vector<4x1xf32>
    %62 = vector.broadcast %61 : vector<4x1xf32> to vector<4x128xf32>
    %63 = arith.mulf %60, %62 : vector<4x128xf32>
    %64 = arith.addf %59, %63 : vector<4x128xf32>
    %c0_22 = arith.constant 0 : index
    %c2 = arith.constant 2 : index
    %65 = vector.load %arg14[%c0_22, %c2] : memref<4x162xf32, #tpu.memory_space<vmem>>, vector<4x128xf32>
    %66 = vector.extract_strided_slice %0 {offsets = [0, 2], sizes = [4, 1], strides = [1, 1]} : vector<4x12xf32> to vector<4x1xf32>
    %67 = vector.broadcast %66 : vector<4x1xf32> to vector<4x128xf32>
    %68 = arith.mulf %65, %67 : vector<4x128xf32>
    %c0_23 = arith.constant 0 : index
    %c18 = arith.constant 18 : index
    %69 = vector.load %arg14[%c0_23, %c18] : memref<4x162xf32, #tpu.memory_space<vmem>>, vector<4x128xf32>
    %70 = vector.extract_strided_slice %0 {offsets = [0, 5], sizes = [4, 1], strides = [1, 1]} : vector<4x12xf32> to vector<4x1xf32>
    %71 = vector.broadcast %70 : vector<4x1xf32> to vector<4x128xf32>
    %72 = arith.mulf %69, %71 : vector<4x128xf32>
    %73 = arith.addf %68, %72 : vector<4x128xf32>
    %c0_24 = arith.constant 0 : index
    %c34 = arith.constant 34 : index
    %74 = vector.load %arg14[%c0_24, %c34] : memref<4x162xf32, #tpu.memory_space<vmem>>, vector<4x128xf32>
    %75 = vector.extract_strided_slice %0 {offsets = [0, 8], sizes = [4, 1], strides = [1, 1]} : vector<4x12xf32> to vector<4x1xf32>
    %76 = vector.broadcast %75 : vector<4x1xf32> to vector<4x128xf32>
    %77 = arith.mulf %74, %76 : vector<4x128xf32>
    %78 = arith.addf %73, %77 : vector<4x128xf32>
    %c0_25 = arith.constant 0 : index
    %c0_26 = arith.constant 0 : index
    %79 = vector.load %arg6[%c0_25, %c0_26] : memref<2x128xf32, #tpu.memory_space<vmem>>, vector<1x128xf32>
    %c1_27 = arith.constant 1 : index
    %c0_28 = arith.constant 0 : index
    %80 = vector.load %arg6[%c1_27, %c0_28] : memref<2x128xf32, #tpu.memory_space<vmem>>, vector<1x128xf32>
    %81 = vector.broadcast %79 : vector<1x128xf32> to vector<4x128xf32>
    %82 = arith.mulf %51, %81 : vector<4x128xf32>
    %83 = arith.addf %82, %64 : vector<4x128xf32>
    %84 = vector.broadcast %80 : vector<1x128xf32> to vector<4x128xf32>
    %85 = arith.mulf %78, %84 : vector<4x128xf32>
    %86 = arith.addf %83, %85 : vector<4x128xf32>
    %87 = vector.broadcast %3 : vector<4x1xf32> to vector<4x128xf32>
    %88 = arith.addf %86, %87 : vector<4x128xf32>
    %c0_29 = arith.constant 0 : index
    %c0_30 = arith.constant 0 : index
    %89 = vector.load %arg7[%c0_29, %c0_30] : memref<4x4xf32, #tpu.memory_space<vmem>>, vector<4x4xf32>
    %cst_31 = arith.constant dense<0.000000e+00> : vector<4x128xf32>
    %90 = tpu.matmul %89, %5, %cst_31 {dimension_numbers = #tpu.dot_dimension_numbers<[1], [0], [0], [1], [0, 0, 1, 1], [], []>} : vector<4x4xf32>, vector<4x128xf32>, vector<4x128xf32> -> vector<4x128xf32>
    %c0_32 = arith.constant 0 : index
    %c0_33 = arith.constant 0 : index
    %91 = vector.load %arg8[%c0_32, %c0_33] : memref<4x1xf32, #tpu.memory_space<vmem>>, vector<4x1xf32>
    %92 = vector.broadcast %91 : vector<4x1xf32> to vector<4x128xf32>
    %93 = arith.addf %90, %92 : vector<4x128xf32>
    %cst_34 = arith.constant 0.000000e+00 : f32
    %94 = vector.broadcast %cst_34 : f32 to vector<4x128xf32>
    %95 = arith.subf %94, %93 : vector<4x128xf32>
    %96 = math.exp %95 : vector<4x128xf32>
    %cst_35 = arith.constant 1.000000e+00 : f32
    %97 = vector.broadcast %cst_35 : f32 to vector<4x128xf32>
    %98 = arith.addf %97, %96 : vector<4x128xf32>
    %99 = tpu.reciprocal %98 {approx = true} : vector<4x128xf32> -> vector<4x128xf32>
    %100 = arith.mulf %88, %99 : vector<4x128xf32>
    %101 = arith.addf %100, %5 : vector<4x128xf32>
    %c0_36 = arith.constant 0 : index
    %c0_37 = arith.constant 0 : index
    %102 = vector.load %arg9[%c0_36, %c0_37] : memref<16x4xf32, #tpu.memory_space<vmem>>, vector<16x4xf32>
    %cst_38 = arith.constant dense<0.000000e+00> : vector<16x128xf32>
    %103 = tpu.matmul %102, %101, %cst_38 {dimension_numbers = #tpu.dot_dimension_numbers<[1], [0], [0], [1], [0, 0, 1, 1], [], []>} : vector<16x4xf32>, vector<4x128xf32>, vector<16x128xf32> -> vector<16x128xf32>
    %c0_39 = arith.constant 0 : index
    %c0_40 = arith.constant 0 : index
    %104 = vector.load %arg10[%c0_39, %c0_40] : memref<16x1xf32, #tpu.memory_space<vmem>>, vector<16x1xf32>
    %105 = vector.broadcast %104 : vector<16x1xf32> to vector<16x128xf32>
    %106 = arith.addf %103, %105 : vector<16x128xf32>
    %107 = vector.extract_strided_slice %106 {offsets = [0, 0], sizes = [8, 128], strides = [1, 1]} : vector<16x128xf32> to vector<8x128xf32>
    %cst_41 = arith.constant 5.000000e-01 : f32
    %108 = vector.broadcast %cst_41 : f32 to vector<8x128xf32>
    %109 = arith.mulf %108, %107 : vector<8x128xf32>
    %cst_42 = arith.constant 4.471500e-02 : f32
    %110 = vector.broadcast %cst_42 : f32 to vector<8x128xf32>
    %111 = arith.mulf %110, %107 : vector<8x128xf32>
    %112 = arith.mulf %111, %107 : vector<8x128xf32>
    %113 = arith.mulf %112, %107 : vector<8x128xf32>
    %114 = arith.addf %107, %113 : vector<8x128xf32>
    %cst_43 = arith.constant 0.797884583 : f32
    %115 = vector.broadcast %cst_43 : f32 to vector<8x128xf32>
    %116 = arith.mulf %115, %114 : vector<8x128xf32>
    %117 = math.tanh %116 : vector<8x128xf32>
    %cst_44 = arith.constant 1.000000e+00 : f32
    %118 = vector.broadcast %cst_44 : f32 to vector<8x128xf32>
    %119 = arith.addf %118, %117 : vector<8x128xf32>
    %120 = arith.mulf %109, %119 : vector<8x128xf32>
    %121 = vector.extract_strided_slice %106 {offsets = [8, 0], sizes = [8, 128], strides = [1, 1]} : vector<16x128xf32> to vector<8x128xf32>
    %c0_45 = arith.constant 0 : index
    %c0_46 = arith.constant 0 : index
    %122 = vector.load %arg11[%c0_45, %c0_46] : memref<8x8xf32, #tpu.memory_space<vmem>>, vector<8x8xf32>
    %cst_47 = arith.constant dense<0.000000e+00> : vector<8x128xf32>
    %123 = tpu.matmul %122, %120, %cst_47 {dimension_numbers = #tpu.dot_dimension_numbers<[1], [0], [0], [1], [0, 0, 1, 1], [], []>} : vector<8x8xf32>, vector<8x128xf32>, vector<8x128xf32> -> vector<8x128xf32>
    %c0_48 = arith.constant 0 : index
    %c0_49 = arith.constant 0 : index
    %124 = vector.load %arg12[%c0_48, %c0_49] : memref<8x1xf32, #tpu.memory_space<vmem>>, vector<8x1xf32>
    %125 = vector.broadcast %124 : vector<8x1xf32> to vector<8x128xf32>
    %126 = arith.addf %123, %125 : vector<8x128xf32>
    %127 = arith.addf %126, %121 : vector<8x128xf32>
    %c0_50 = arith.constant 0 : index
    %c0_51 = arith.constant 0 : index
    %c0_52 = arith.constant 0 : index
    %128 = vector.load %arg13[%c0_50, %c0_51, %c0_52] : memref<1x8x128xf32, #tpu.memory_space<vmem>>, vector<1x8x128xf32>
    %129 = vector.shape_cast %128 : vector<1x8x128xf32> to vector<8x128xf32>
    %130 = vector.shape_cast %127 : vector<8x128xf32> to vector<1x8x128xf32>
    tpu.vector_store %arg13[%c0_50, %c0_51, %c0_52], %130 {strides = array<i32>} : memref<1x8x128xf32, #tpu.memory_space<vmem>>, vector<1x8x128xf32>,
    return
  }
  func.func @transform_0(%arg0: i32, %arg1: i32) -> (i32, i32, i32) {
    %c0_i32 = arith.constant 0 : i32
    %c0_i32_0 = arith.constant 0 : i32
    return %arg0, %c0_i32, %arg1 : i32, i32, i32
  }
  func.func @transform_1(%arg0: i32, %arg1: i32) -> (i32, i32, i32) {
    %c1_i32 = arith.constant 1 : i32
    %0 = arith.muli %arg1, %c1_i32 : i32
    %c1_i32_0 = arith.constant 1 : i32
    %1 = arith.subi %0, %c1_i32_0 : i32
    %c0_i32 = arith.constant 0 : i32
    %2 = arith.maxsi %1, %c0_i32 : i32
    %c0_i32_1 = arith.constant 0 : i32
    %c0_i32_2 = arith.constant 0 : i32
    return %arg0, %c0_i32_1, %2 : i32, i32, i32
  }
  func.func @transform_2(%arg0: i32, %arg1: i32) -> (i32, i32, i32) {
    %c1_i32 = arith.constant 1 : i32
    %0 = arith.addi %arg1, %c1_i32 : i32
    %c1_i32_0 = arith.constant 1 : i32
    %1 = arith.muli %0, %c1_i32_0 : i32
    %c1_i32_1 = arith.constant 1 : i32
    %2 = arith.minsi %1, %c1_i32_1 : i32
    %c0_i32 = arith.constant 0 : i32
    %c0_i32_2 = arith.constant 0 : i32
    return %arg0, %c0_i32, %2 : i32, i32, i32
  }
  func.func @transform_3(%arg0: i32, %arg1: i32) -> (i32, i32) {
    %c0_i32 = arith.constant 0 : i32
    %c0_i32_0 = arith.constant 0 : i32
    %c0_i32_1 = arith.constant 0 : i32
    return %c0_i32, %c0_i32_0 : i32, i32
  }
  func.func @transform_4(%arg0: i32, %arg1: i32) -> (i32, i32) {
    %c0_i32 = arith.constant 0 : i32
    %c0_i32_0 = arith.constant 0 : i32
    %c0_i32_1 = arith.constant 0 : i32
    return %c0_i32, %c0_i32_0 : i32, i32
  }
  func.func @transform_5(%arg0: i32, %arg1: i32) -> (i32, i32) {
    %c0_i32 = arith.constant 0 : i32
    %c0_i32_0 = arith.constant 0 : i32
    %c0_i32_1 = arith.constant 0 : i32
    return %c0_i32, %c0_i32_0 : i32, i32
  }
  func.func @transform_6(%arg0: i32, %arg1: i32) -> (i32, i32) {
    %c0_i32 = arith.constant 0 : i32
    %c0_i32_0 = arith.constant 0 : i32
    %c0_i32_1 = arith.constant 0 : i32
    return %c0_i32, %c0_i32_0 : i32, i32
  }
  func.func @transform_7(%arg0: i32, %arg1: i32) -> (i32, i32) {
    %c0_i32 = arith.constant 0 : i32
    %c0_i32_0 = arith.constant 0 : i32
    %c0_i32_1 = arith.constant 0 : i32
    return %c0_i32, %c0_i32_0 : i32, i32
  }
  func.func @transform_8(%arg0: i32, %arg1: i32) -> (i32, i32) {
    %c0_i32 = arith.constant 0 : i32
    %c0_i32_0 = arith.constant 0 : i32
    %c0_i32_1 = arith.constant 0 : i32
    return %c0_i32, %c0_i32_0 : i32, i32
  }
  func.func @transform_9(%arg0: i32, %arg1: i32) -> (i32, i32) {
    %c0_i32 = arith.constant 0 : i32
    %c0_i32_0 = arith.constant 0 : i32
    %c0_i32_1 = arith.constant 0 : i32
    return %c0_i32, %c0_i32_0 : i32, i32
  }
  func.func @transform_10(%arg0: i32, %arg1: i32) -> (i32, i32) {
    %c0_i32 = arith.constant 0 : i32
    %c0_i32_0 = arith.constant 0 : i32
    %c0_i32_1 = arith.constant 0 : i32
    return %c0_i32, %c0_i32_0 : i32, i32
  }
  func.func @transform_11(%arg0: i32, %arg1: i32) -> (i32, i32, i32) {
    %c0_i32 = arith.constant 0 : i32
    %c0_i32_0 = arith.constant 0 : i32
    return %arg0, %c0_i32, %arg1 : i32, i32, i32
  }
}

</mosaic_0001>

<llo_original>
// kernel: tpu_custom_call.1
$region0: #{tpu_custom_call.1}
  #allocation0 [shape = 'u32[]', space=smem, size = 0x4, offset = 0x4, fixed_abs, tag = 'smem constant byte address 0x4 - core index']
  #allocation1 [shape = 'u32[144,128]{1,0:T(1,128)}', space=vmem, size = 0x12000, scoped, tag = 'internal scratch']
  #allocation2 [shape = 'f32[4,162]{1,0:T(4,128)}', space=vmem, size = 0x1000, scoped, tag = 'scratch operand']
  %s0 = inlined_call_operand.vmem [shape: f32[2,4,256], index: 0, kind: input, shape index: {}]
  %s1 = inlined_call_operand.vmem [shape: f32[2,4,256], index: 1, kind: input, shape index: {}]
  %s2 = inlined_call_operand.vmem [shape: f32[2,4,256], index: 2, kind: input, shape index: {}]
  %s3 = inlined_call_operand.hbm [shape: f32[4,12], index: 3, kind: input, shape index: {}]
  %s4 = inlined_call_operand.hbm [shape: f32[2,128], index: 4, kind: input, shape index: {}]
  %s5 = inlined_call_operand.hbm [shape: f32[4,4], index: 5, kind: input, shape index: {}]
  %s6 = inlined_call_operand.vmem [shape: f32[4,1], index: 6, kind: input, shape index: {}]
  %s7 = inlined_call_operand.vmem [shape: f32[16,4], index: 7, kind: input, shape index: {}]
  %s8 = inlined_call_operand.vmem [shape: f32[16,1], index: 8, kind: input, shape index: {}]
  %s9 = inlined_call_operand.vmem [shape: f32[8,8], index: 9, kind: input, shape index: {}]
  %s10 = inlined_call_operand.vmem [shape: f32[8,1], index: 10, kind: input, shape index: {}]
  %s11 = inlined_call_operand.hbm [shape: f32[2,8,256], index: 11, kind: output, shape index: {}]
  %s12 = sld [smem:[#allocation0]]
  $region89: #{tpu_custom_call.1} parent=0
    _
  %s14 = ssub.s32 1, %s12
  %s15 = scalar_select 0, %s14, %s12
  $region1: #{tpu_custom_call.1} parent=0
    #allocation3 [shape = 'u8[2048]{0}', space=vmem, size = 0x800, scoped, tag = 'input window, operand 3, single buffered']
    #allocation4 [shape = 's32[2]{0}', space=sflag, size = 0x8, scoped, tag = 'scoped memory for tpu_custom_call.1']
    #allocation5 [shape = 's32[2]{0}', space=sflag, size = 0x8, scoped, tag = 'scoped memory for tpu_custom_call.1']
    #allocation6 [shape = 'u8[1024]{0}', space=vmem, size = 0x400, scoped, tag = 'input window, operand 4, single buffered']
    #allocation7 [shape = 's32[1]{0}', space=sflag, size = 0x4, scoped, tag = 'scoped memory for tpu_custom_call.1']
    #allocation8 [shape = 'u8[2048]{0}', space=vmem, size = 0x800, scoped, tag = 'input window, operand 5, single buffered']
    #allocation9 [shape = 'u8[8192]{0}', space=vmem, size = 0x2000, scoped, tag = 'output window, operand 0']
    %16 = vsyncpa [#allocation4], 0
    %17 = vsyncpa [#allocation7], 0
    %18 = vsyncpa [#allocation5], 0
    %s19 = scalar_lea.sflag [#allocation5], 1
    %20 = vsyncpa %s19, 0
    loop: start=0, step=1, limit=6
    $region2: #{tpu_custom_call.1} parent=1 // loop_pre_header
      _
    $region3: #{tpu_custom_call.1} parent=1 // loop_header
      %s22 = sphi 0, %s26
      %p23 = scmp.ge.s32.totalorder %s22, 6
      %s29 = sphi 0, %s41
      %s30 = sphi 0, %s37
      %s31 = sphi 0, %s29
      %s32 = sphi 0, %s30
      %s33 = sphi 0, %s31
      %s34 = sphi 0, %s32
      %s46 = sphi 0, %s48
      %s49 = sphi 0, %s46
      %s50 = sphi 0, %s49
      %s66 = sphi 0, %s50
      %s80 = sphi 0, %s82
      %s83 = sphi 0, %s80
      %s84 = sphi 0, %s83
      %s100 = sphi 0, %s84
      %s114 = sphi 0, %s116
      %s117 = sphi 0, %s114
      %s118 = sphi 0, %s117
      %s134 = sphi 0, %s118
      %s138 = sphi 0, %s138
      %s140 = sphi 0, %s138
      %s141 = sphi 0, %s140
      %s155 = sphi 0, %s141
      %s159 = sphi 0, %s159
      %s161 = sphi 0, %s159
      %s162 = sphi 0, %s161
      %s176 = sphi 0, %s162
      %s180 = sphi 0, %s180
      %s182 = sphi 0, %s180
      %s183 = sphi 0, %s182
      %s197 = sphi 0, %s183
      %s201 = sphi 0, %s201
      %s203 = sphi 0, %s201
      %s204 = sphi 0, %s203
      %s218 = sphi 0, %s204
      %s222 = sphi 0, %s222
      %s224 = sphi 0, %s222
      %s225 = sphi 0, %s224
      %s239 = sphi 0, %s225
      %s243 = sphi 0, %s243
      %s245 = sphi 0, %s243
      %s246 = sphi 0, %s245
      %s260 = sphi 0, %s246
      %s264 = sphi 0, %s264
      %s266 = sphi 0, %s264
      %s267 = sphi 0, %s266
      %s281 = sphi 0, %s267
      %s285 = sphi 0, %s285
      %s287 = sphi 0, %s285
      %s288 = sphi 0, %s287
      %s302 = sphi 0, %s288
      %s310 = sphi 0, %s312
      %s313 = sphi 0, %s310
      %s314 = sphi 0, %s313
      %s330 = sphi 0, %s314
    $region4: #{tpu_custom_call.1} parent=1 // loop_header_branch
      %25 = sbr.rel (%p23) target = $region8
    $region5: #{tpu_custom_call.1} parent=1 // loop_body
      %s27 = ssub.s32 %s22, 1
      %s28 = ssub.s32 %s22, 2
      %s35 = sadd.s32 1, %s30
      %p36 = scmp.ge.s32.totalorder %s35, 2
      %s37 = scalar_select %p36, 0, %s35
      %s38 = sadd.s32 1, %s29
      %s39 = scalar_select %p36, %s38, %s29
      %p40 = scmp.ge.s32.totalorder %s39, 2
      %s41 = scalar_select %p40, 0, %s39
      %s42 = ssub.s32 %s29, %s41
      %s43 = ssub.s32 %s30, %s37
      %s44 = sor.u32 %s42, %s43
      %p45 = scmp.eq.s32.totalorder %s44, 0
      %s47 = sadd.s32 %s46, 1
      %s48 = scalar_select %p45, %s46, %s47
      %p51 = pneg %p45
      %p52 = scmp.eq.s32.totalorder %s22, 3
      %p53 = por %p51, %p52
      %p54 = scmp.ne.s32.totalorder %s46, %s49
      %p55 = scmp.eq.s32.totalorder %s22, 0
      %p56 = por %p54, %p55
      %p57 = scmp.ne.s32.totalorder %s46, %s49
      %p58 = scmp.eq.s32.totalorder %s27, 3
      %p59 = por %p57, %p58
      %p60 = scmp.ne.s32.totalorder %s49, %s50
      %p61 = scmp.eq.s32.totalorder %s27, 0
      %p62 = por %p60, %p61
      %p63 = scmp.ne.s32.totalorder %s49, %s50
      %p64 = scmp.eq.s32.totalorder %s28, 3
      %p65 = por %p63, %p64
      %p67 = scmp.ne.s32.totalorder %s50, %s66
      %p68 = scmp.eq.s32.totalorder %s28, 0
      %p69 = por %p67, %p68
      %s70 = ssub.s32 %s30, 1
      %p71 = scmp.gt.s32.totalorder %s70, 0
      %s72 = scalar_select %p71, %s70, 0
      %s73 = ssub.s32 %s37, 1
      %p74 = scmp.gt.s32.totalorder %s73, 0
      %s75 = scalar_select %p74, %s73, 0
      %s76 = ssub.s32 %s29, %s41
      %s77 = ssub.s32 %s72, %s75
      %s78 = sor.u32 %s76, %s77
      %p79 = scmp.eq.s32.totalorder %s78, 0
      %s81 = sadd.s32 %s80, 1
      %s82 = scalar_select %p79, %s80, %s81
      %p85 = pneg %p79
      %p86 = scmp.eq.s32.totalorder %s22, 3
      %p87 = por %p85, %p86
      %p88 = scmp.ne.s32.totalorder %s80, %s83
      %p89 = scmp.eq.s32.totalorder %s22, 0
      %p90 = por %p88, %p89
      %p91 = scmp.ne.s32.totalorder %s80, %s83
      %p92 = scmp.eq.s32.totalorder %s27, 3
      %p93 = por %p91, %p92
      %p94 = scmp.ne.s32.totalorder %s83, %s84
      %p95 = scmp.eq.s32.totalorder %s27, 0
      %p96 = por %p94, %p95
      %p97 = scmp.ne.s32.totalorder %s83, %s84
      %p98 = scmp.eq.s32.totalorder %s28, 3
      %p99 = por %p97, %p98
      %p101 = scmp.ne.s32.totalorder %s84, %s100
      %p102 = scmp.eq.s32.totalorder %s28, 0
      %p103 = por %p101, %p102
      %s104 = sadd.s32 %s30, 1
      %p105 = scmp.lt.s32.totalorder %s104, 1
      %s106 = scalar_select %p105, %s104, 1
      %s107 = sadd.s32 %s37, 1
      %p108 = scmp.lt.s32.totalorder %s107, 1
      %s109 = scalar_select %p108, %s107, 1
      %s110 = ssub.s32 %s29, %s41
      %s111 = ssub.s32 %s106, %s109
      %s112 = sor.u32 %s110, %s111
      %p113 = scmp.eq.s32.totalorder %s112, 0
      %s115 = sadd.s32 %s114, 1
      %s116 = scalar_select %p113, %s114, %s115
      %p119 = pneg %p113
      %p120 = scmp.eq.s32.totalorder %s22, 3
      %p121 = por %p119, %p120
      %p122 = scmp.ne.s32.totalorder %s114, %s117
      %p123 = scmp.eq.s32.totalorder %s22, 0
      %p124 = por %p122, %p123
      %p125 = scmp.ne.s32.totalorder %s114, %s117
      %p126 = scmp.eq.s32.totalorder %s27, 3
      %p127 = por %p125, %p126
      %p128 = scmp.ne.s32.totalorder %s117, %s118
      %p129 = scmp.eq.s32.totalorder %s27, 0
      %p130 = por %p128, %p129
      %p131 = scmp.ne.s32.totalorder %s117, %s118
      %p132 = scmp.eq.s32.totalorder %s28, 3
      %p133 = por %p131, %p132
      %p135 = scmp.ne.s32.totalorder %s118, %s134
      %p136 = scmp.eq.s32.totalorder %s28, 0
      %p137 = por %p135, %p136
      %s139 = sadd.s32 %s138, 1
      %p142 = scmp.eq.s32.totalorder %s22, 3
      %p143 = scmp.ne.s32.totalorder %s138, %s140
      %p144 = scmp.eq.s32.totalorder %s22, 0
      %p145 = por %p143, %p144
      %p146 = scmp.ne.s32.totalorder %s138, %s140
      %p147 = scmp.eq.s32.totalorder %s27, 3
      %p148 = por %p146, %p147
      %p149 = scmp.ne.s32.totalorder %s140, %s141
      %p150 = scmp.eq.s32.totalorder %s27, 0
      %p151 = por %p149, %p150
      %p152 = scmp.ne.s32.totalorder %s140, %s141
      %p153 = scmp.eq.s32.totalorder %s28, 3
      %p154 = por %p152, %p153
      %p156 = scmp.ne.s32.totalorder %s141, %s155
      %p157 = scmp.eq.s32.totalorder %s28, 0
      %p158 = por %p156, %p157
      %s160 = sadd.s32 %s159, 1
      %p163 = scmp.eq.s32.totalorder %s22, 3
      %p164 = scmp.ne.s32.totalorder %s159, %s161
      %p165 = scmp.eq.s32.totalorder %s22, 0
      %p166 = por %p164, %p165
      %p167 = scmp.ne.s32.totalorder %s159, %s161
      %p168 = scmp.eq.s32.totalorder %s27, 3
      %p169 = por %p167, %p168
      %p170 = scmp.ne.s32.totalorder %s161, %s162
      %p171 = scmp.eq.s32.totalorder %s27, 0
      %p172 = por %p170, %p171
      %p173 = scmp.ne.s32.totalorder %s161, %s162
      %p174 = scmp.eq.s32.totalorder %s28, 3
      %p175 = por %p173, %p174
      %p177 = scmp.ne.s32.totalorder %s162, %s176
      %p178 = scmp.eq.s32.totalorder %s28, 0
      %p179 = por %p177, %p178
      %s181 = sadd.s32 %s180, 1
      %p184 = scmp.eq.s32.totalorder %s22, 3
      %p185 = scmp.ne.s32.totalorder %s180, %s182
      %p186 = scmp.eq.s32.totalorder %s22, 0
      %p187 = por %p185, %p186
      %p188 = scmp.ne.s32.totalorder %s180, %s182
      %p189 = scmp.eq.s32.totalorder %s27, 3
      %p190 = por %p188, %p189
      %p191 = scmp.ne.s32.totalorder %s182, %s183
      %p192 = scmp.eq.s32.totalorder %s27, 0
      %p193 = por %p191, %p192
      %p194 = scmp.ne.s32.totalorder %s182, %s183
      %p195 = scmp.eq.s32.totalorder %s28, 3
      %p196 = por %p194, %p195
      %p198 = scmp.ne.s32.totalorder %s183, %s197
      %p199 = scmp.eq.s32.totalorder %s28, 0
      %p200 = por %p198, %p199
      %s202 = sadd.s32 %s201, 1
      %p205 = scmp.eq.s32.totalorder %s22, 3
      %p206 = scmp.ne.s32.totalorder %s201, %s203
      %p207 = scmp.eq.s32.totalorder %s22, 0
      %p208 = por %p206, %p207
      %p209 = scmp.ne.s32.totalorder %s201, %s203
      %p210 = scmp.eq.s32.totalorder %s27, 3
      %p211 = por %p209, %p210
      %p212 = scmp.ne.s32.totalorder %s203, %s204
      %p213 = scmp.eq.s32.totalorder %s27, 0
      %p214 = por %p212, %p213
      %p215 = scmp.ne.s32.totalorder %s203, %s204
      %p216 = scmp.eq.s32.totalorder %s28, 3
      %p217 = por %p215, %p216
      %p219 = scmp.ne.s32.totalorder %s204, %s218
      %p220 = scmp.eq.s32.totalorder %s28, 0
      %p221 = por %p219, %p220
      %s223 = sadd.s32 %s222, 1
      %p226 = scmp.eq.s32.totalorder %s22, 3
      %p227 = scmp.ne.s32.totalorder %s222, %s224
      %p228 = scmp.eq.s32.totalorder %s22, 0
      %p229 = por %p227, %p228
      %p230 = scmp.ne.s32.totalorder %s222, %s224
      %p231 = scmp.eq.s32.totalorder %s27, 3
      %p232 = por %p230, %p231
      %p233 = scmp.ne.s32.totalorder %s224, %s225
      %p234 = scmp.eq.s32.totalorder %s27, 0
      %p235 = por %p233, %p234
      %p236 = scmp.ne.s32.totalorder %s224, %s225
      %p237 = scmp.eq.s32.totalorder %s28, 3
      %p238 = por %p236, %p237
      %p240 = scmp.ne.s32.totalorder %s225, %s239
      %p241 = scmp.eq.s32.totalorder %s28, 0
      %p242 = por %p240, %p241
      %s244 = sadd.s32 %s243, 1
      %p247 = scmp.eq.s32.totalorder %s22, 3
      %p248 = scmp.ne.s32.totalorder %s243, %s245
      %p249 = scmp.eq.s32.totalorder %s22, 0
      %p250 = por %p248, %p249
      %p251 = scmp.ne.s32.totalorder %s243, %s245
      %p252 = scmp.eq.s32.totalorder %s27, 3
      %p253 = por %p251, %p252
      %p254 = scmp.ne.s32.totalorder %s245, %s246
      %p255 = scmp.eq.s32.totalorder %s27, 0
      %p256 = por %p254, %p255
      %p257 = scmp.ne.s32.totalorder %s245, %s246
      %p258 = scmp.eq.s32.totalorder %s28, 3
      %p259 = por %p257, %p258
      %p261 = scmp.ne.s32.totalorder %s246, %s260
      %p262 = scmp.eq.s32.totalorder %s28, 0
      %p263 = por %p261, %p262
      %s265 = sadd.s32 %s264, 1
      %p268 = scmp.eq.s32.totalorder %s22, 3
      %p269 = scmp.ne.s32.totalorder %s264, %s266
      %p270 = scmp.eq.s32.totalorder %s22, 0
      %p271 = por %p269, %p270
      %p272 = scmp.ne.s32.totalorder %s264, %s266
      %p273 = scmp.eq.s32.totalorder %s27, 3
      %p274 = por %p272, %p273
      %p275 = scmp.ne.s32.totalorder %s266, %s267
      %p276 = scmp.eq.s32.totalorder %s27, 0
      %p277 = por %p275, %p276
      %p278 = scmp.ne.s32.totalorder %s266, %s267
      %p279 = scmp.eq.s32.totalorder %s28, 3
      %p280 = por %p278, %p279
      %p282 = scmp.ne.s32.totalorder %s267, %s281
      %p283 = scmp.eq.s32.totalorder %s28, 0
      %p284 = por %p282, %p283
      %s286 = sadd.s32 %s285, 1
      %p289 = scmp.eq.s32.totalorder %s22, 3
      %p290 = scmp.ne.s32.totalorder %s285, %s287
      %p291 = scmp.eq.s32.totalorder %s22, 0
      %p292 = por %p290, %p291
      %p293 = scmp.ne.s32.totalorder %s285, %s287
      %p294 = scmp.eq.s32.totalorder %s27, 3
      %p295 = por %p293, %p294
      %p296 = scmp.ne.s32.totalorder %s287, %s288
      %p297 = scmp.eq.s32.totalorder %s27, 0
      %p298 = por %p296, %p297
      %p299 = scmp.ne.s32.totalorder %s287, %s288
      %p300 = scmp.eq.s32.totalorder %s28, 3
      %p301 = por %p299, %p300
      %p303 = scmp.ne.s32.totalorder %s288, %s302
      %p304 = scmp.eq.s32.totalorder %s28, 0
      %p305 = por %p303, %p304
      %s306 = ssub.s32 %s29, %s41
      %s307 = ssub.s32 %s30, %s37
      %s308 = sor.u32 %s306, %s307
      %p309 = scmp.eq.s32.totalorder %s308, 0
      %s311 = sadd.s32 %s310, 1
      %s312 = scalar_select %p309, %s310, %s311
      %p315 = pneg %p309
      %p316 = scmp.eq.s32.totalorder %s22, 3
      %p317 = por %p315, %p316
      %p318 = scmp.ne.s32.totalorder %s310, %s313
      %p319 = scmp.eq.s32.totalorder %s22, 0
      %p320 = por %p318, %p319
      %p321 = scmp.ne.s32.totalorder %s310, %s313
      %p322 = scmp.eq.s32.totalorder %s27, 3
      %p323 = por %p321, %p322
      %p324 = scmp.ne.s32.totalorder %s313, %s314
      %p325 = scmp.eq.s32.totalorder %s27, 0
      %p326 = por %p324, %p325
      %p327 = scmp.ne.s32.totalorder %s313, %s314
      %p328 = scmp.eq.s32.totalorder %s28, 3
      %p329 = por %p327, %p328
      %p331 = scmp.ne.s32.totalorder %s314, %s330
      %p332 = scmp.eq.s32.totalorder %s28, 0
      %p333 = por %p331, %p332
      %p334 = scmp.le.s32.totalorder 1, %s22
      %p335 = scmp.lt.s32.totalorder %s22, 5
      %p336 = pnand %p334, %p335
      %p337 = pneg %p336
      // Predicated region
      $region9: #{tpu_custom_call.1} parent=5 // pred_check
        _
      $region10: #{tpu_custom_call.1} parent=5 // pred_check_branch
        %339 = sbr.rel (%p336) target = $region12
      $region11: #{tpu_custom_call.1} parent=5 // pred_region
        %s340 = ssub.s32 %s22, 1
        // Predicated region
        $region13: #{tpu_custom_call.1} parent=11 // pred_check
          %p341 = pneg %p151
        $region14: #{tpu_custom_call.1} parent=11 // pred_check_branch
          %343 = sbr.rel (%p341) target = $region16
        $region15: #{tpu_custom_call.1} parent=11 // pred_region
          %s345 = ssub.s32 64, 64
          %346 = vsyncadd [#allocation4], %s345
          %s348 = sshll.u32 [#allocation3], 4
          %s349 = int_to_ptr.vmem [resolvable:$true] %s348
          %351 = dma.hbm_to_vmem [thread:$0]  %s3, 64, %s349, [#allocation4]
        $region16: #{tpu_custom_call.1} parent=11 // pred_fallthru
          _
        // Predicated region
        $region17: #{tpu_custom_call.1} parent=11 // pred_check
          %p352 = pneg %p172
        $region18: #{tpu_custom_call.1} parent=11 // pred_check_branch
          %354 = sbr.rel (%p352) target = $region20
        $region19: #{tpu_custom_call.1} parent=11 // pred_region
          %s356 = ssub.s32 32, 32
          %357 = vsyncadd [#allocation7], %s356
          %s359 = sshll.u32 [#allocation6], 4
          %s360 = int_to_ptr.vmem [resolvable:$true] %s359
          %362 = dma.hbm_to_vmem [thread:$0]  %s4, 32, %s360, [#allocation7]
        $region20: #{tpu_custom_call.1} parent=11 // pred_fallthru
          _
        // Predicated region
        $region21: #{tpu_custom_call.1} parent=11 // pred_check
          %p363 = pneg %p193
        $region22: #{tpu_custom_call.1} parent=11 // pred_check_branch
          %365 = sbr.rel (%p363) target = $region24
        $region23: #{tpu_custom_call.1} parent=11 // pred_region
          %s367 = ssub.s32 64, 64
          %368 = vsyncadd [#allocation7], %s367
          %s370 = sshll.u32 [#allocation8], 4
          %s371 = int_to_ptr.vmem [resolvable:$true] %s370
          %373 = dma.hbm_to_vmem [thread:$0]  %s5, 64, %s371, [#allocation7]
        $region24: #{tpu_custom_call.1} parent=11 // pred_fallthru
          _
        // Predicated region
        $region25: #{tpu_custom_call.1} parent=11 // pred_check
          %p374 = pneg %p214
        $region26: #{tpu_custom_call.1} parent=11 // pred_check_branch
          %376 = sbr.rel (%p374) target = $region28
        $region27: #{tpu_custom_call.1} parent=11 // pred_region
          _
        $region28: #{tpu_custom_call.1} parent=11 // pred_fallthru
          _
        // Predicated region
        $region29: #{tpu_custom_call.1} parent=11 // pred_check
          %p377 = pneg %p235
        $region30: #{tpu_custom_call.1} parent=11 // pred_check_branch
          %379 = sbr.rel (%p377) target = $region32
        $region31: #{tpu_custom_call.1} parent=11 // pred_region
          _
        $region32: #{tpu_custom_call.1} parent=11 // pred_fallthru
          _
        // Predicated region
        $region33: #{tpu_custom_call.1} parent=11 // pred_check
          %p380 = pneg %p256
        $region34: #{tpu_custom_call.1} parent=11 // pred_check_branch
          %382 = sbr.rel (%p380) target = $region36
        $region35: #{tpu_custom_call.1} parent=11 // pred_region
          _
        $region36: #{tpu_custom_call.1} parent=11 // pred_fallthru
          _
        // Predicated region
        $region37: #{tpu_custom_call.1} parent=11 // pred_check
          %p383 = pneg %p277
        $region38: #{tpu_custom_call.1} parent=11 // pred_check_branch
          %385 = sbr.rel (%p383) target = $region40
        $region39: #{tpu_custom_call.1} parent=11 // pred_region
          _
        $region40: #{tpu_custom_call.1} parent=11 // pred_fallthru
          _
        // Predicated region
        $region41: #{tpu_custom_call.1} parent=11 // pred_check
          %p386 = pneg %p298
        $region42: #{tpu_custom_call.1} parent=11 // pred_check_branch
          %388 = sbr.rel (%p386) target = $region44
        $region43: #{tpu_custom_call.1} parent=11 // pred_region
          _
        $region44: #{tpu_custom_call.1} parent=11 // pred_fallthru
          _
      $region12: #{tpu_custom_call.1} parent=5 // pred_fallthru
        _
      %p389 = scmp.lt.s32.totalorder %s22, 4
      // Predicated region
      $region45: #{tpu_custom_call.1} parent=5 // pred_check
        %p390 = pneg %p389
      $region46: #{tpu_custom_call.1} parent=5 // pred_check_branch
        %392 = sbr.rel (%p390) target = $region48
      $region47: #{tpu_custom_call.1} parent=5 // pred_region
        // Predicated region
        $region49: #{tpu_custom_call.1} parent=47 // pred_check
          %p393 = pneg %p56
        $region50: #{tpu_custom_call.1} parent=47 // pred_check_branch
          %395 = sbr.rel (%p393) target = $region52
        $region51: #{tpu_custom_call.1} parent=47 // pred_region
          %p396 = scmp.lt.s32.totalorder %s29, 1
          %s397 = scalar_select %p396, %s29, 1
          %p398 = scmp.lt.s32.totalorder %s30, 1
          %s399 = scalar_select %p398, %s30, 1
          %s400 = smul.addr %s397, 2
          %s401 = sadd.s32 %s399, %s400
          %s402 = smul.addr %s401, 4
          %s403 = scalar_lea.vmem %s0, %s402
        $region52: #{tpu_custom_call.1} parent=47 // pred_fallthru
          _
        // Predicated region
        $region53: #{tpu_custom_call.1} parent=47 // pred_check
          %p404 = pneg %p90
        $region54: #{tpu_custom_call.1} parent=47 // pred_check_branch
          %406 = sbr.rel (%p404) target = $region56
        $region55: #{tpu_custom_call.1} parent=47 // pred_region
          %s407 = ssub.s32 %s30, 1
          %p408 = scmp.gt.s32.totalorder %s407, 0
          %s409 = scalar_select %p408, %s407, 0
          %p410 = scmp.lt.s32.totalorder %s29, 1
          %s411 = scalar_select %p410, %s29, 1
          %p412 = scmp.lt.s32.totalorder %s409, 1
          %s413 = scalar_select %p412, %s409, 1
          %s414 = smul.addr %s411, 2
          %s415 = sadd.s32 %s413, %s414
          %s416 = smul.addr %s415, 4
          %s417 = scalar_lea.vmem %s1, %s416
          %s418 = ssub.s32 %s30, 1
          %p419 = scmp.gt.s32.totalorder %s418, 0
          %s420 = scalar_select %p419, %s418, 0
        $region56: #{tpu_custom_call.1} parent=47 // pred_fallthru
          _
        // Predicated region
        $region57: #{tpu_custom_call.1} parent=47 // pred_check
          %p421 = pneg %p124
        $region58: #{tpu_custom_call.1} parent=47 // pred_check_branch
          %423 = sbr.rel (%p421) target = $region60
        $region59: #{tpu_custom_call.1} parent=47 // pred_region
          %s424 = sadd.s32 %s30, 1
          %p425 = scmp.lt.s32.totalorder %s424, 1
          %s426 = scalar_select %p425, %s424, 1
          %p427 = scmp.lt.s32.totalorder %s29, 1
          %s428 = scalar_select %p427, %s29, 1
          %p429 = scmp.lt.s32.totalorder %s426, 1
          %s430 = scalar_select %p429, %s426, 1
          %s431 = smul.addr %s428, 2
          %s432 = sadd.s32 %s430, %s431
          %s433 = smul.addr %s432, 4
          %s434 = scalar_lea.vmem %s2, %s433
          %s435 = sadd.s32 %s30, 1
          %p436 = scmp.lt.s32.totalorder %s435, 1
          %s437 = scalar_select %p436, %s435, 1
        $region60: #{tpu_custom_call.1} parent=47 // pred_fallthru
          _
      $region48: #{tpu_custom_call.1} parent=5 // pred_fallthru
        _
      %p438 = scmp.le.s32.totalorder 1, %s22
      %p439 = scmp.lt.s32.totalorder %s22, 5
      %p440 = pnand %p438, %p439
      %p441 = pneg %p440
      // Predicated region
      $region61: #{tpu_custom_call.1} parent=5 // pred_check
        _
      $region62: #{tpu_custom_call.1} parent=5 // pred_check_branch
        %443 = sbr.rel (%p440) target = $region64
      $region63: #{tpu_custom_call.1} parent=5 // pred_region
        %s444 = ssub.s32 %s22, 1
        // Predicated region
        $region65: #{tpu_custom_call.1} parent=63 // pred_check
          %p445 = pneg %p151
        $region66: #{tpu_custom_call.1} parent=63 // pred_check_branch
          %447 = sbr.rel (%p445) target = $region68
        $region67: #{tpu_custom_call.1} parent=63 // pred_region
          %448 = dma.done [#allocation4], 64
        $region68: #{tpu_custom_call.1} parent=63 // pred_fallthru
          _
        // Predicated region
        $region69: #{tpu_custom_call.1} parent=63 // pred_check
          %p449 = pneg %p172
        $region70: #{tpu_custom_call.1} parent=63 // pred_check_branch
          %451 = sbr.rel (%p449) target = $region72
        $region71: #{tpu_custom_call.1} parent=63 // pred_region
          %452 = dma.done [#allocation7], 32
        $region72: #{tpu_custom_call.1} parent=63 // pred_fallthru
          _
        // Predicated region
        $region73: #{tpu_custom_call.1} parent=63 // pred_check
          %p453 = pneg %p193
        $region74: #{tpu_custom_call.1} parent=63 // pred_check_branch
          %455 = sbr.rel (%p453) target = $region76
        $region75: #{tpu_custom_call.1} parent=63 // pred_region
          %456 = dma.done [#allocation7], 64
        $region76: #{tpu_custom_call.1} parent=63 // pred_fallthru
          _
        %p457 = scmp.lt.s32.totalorder %s31, 1
        %s458 = scalar_select %p457, %s31, 1
        %p459 = scmp.lt.s32.totalorder %s32, 1
        %s460 = scalar_select %p459, %s32, 1
        %s461 = smul.addr %s458, 2
        %s462 = sadd.s32 %s460, %s461
        %s463 = smul.addr %s462, 4
        %s464 = scalar_lea.vmem %s0, %s463
        %p465 = pneg %p62
        %p466 = pneg %p59
        %s467 = ssub.s32 %s32, 1
        %p468 = scmp.gt.s32.totalorder %s467, 0
        %s469 = scalar_select %p468, %s467, 0
        %p470 = scmp.lt.s32.totalorder %s31, 1
        %s471 = scalar_select %p470, %s31, 1
        %p472 = scmp.lt.s32.totalorder %s469, 1
        %s473 = scalar_select %p472, %s469, 1
        %s474 = smul.addr %s471, 2
        %s475 = sadd.s32 %s473, %s474
        %s476 = smul.addr %s475, 4
        %s477 = scalar_lea.vmem %s1, %s476
        %p478 = pneg %p96
        %p479 = pneg %p93
        %s480 = sadd.s32 %s32, 1
        %p481 = scmp.lt.s32.totalorder %s480, 1
        %s482 = scalar_select %p481, %s480, 1
        %p483 = scmp.lt.s32.totalorder %s31, 1
        %s484 = scalar_select %p483, %s31, 1
        %p485 = scmp.lt.s32.totalorder %s482, 1
        %s486 = scalar_select %p485, %s482, 1
        %s487 = smul.addr %s484, 2
        %s488 = sadd.s32 %s486, %s487
        %s489 = smul.addr %s488, 4
        %s490 = scalar_lea.vmem %s2, %s489
        %p491 = pneg %p130
        %p492 = pneg %p127
        %p493 = pneg %p151
        %p494 = pneg %p148
        %p495 = pneg %p172
        %p496 = pneg %p169
        %p497 = pneg %p193
        %p498 = pneg %p190
        %p499 = pneg %p214
        %p500 = pneg %p211
        %p501 = pneg %p235
        %p502 = pneg %p232
        %p503 = pneg %p256
        %p504 = pneg %p253
        %p505 = pneg %p277
        %p506 = pneg %p274
        %p507 = pneg %p298
        %p508 = pneg %p295
        %p509 = pneg %p326
        %p510 = pneg %p323
        %s511 = sand.u32 %s313, 1
        %s512 = scalar_lea.sflag [#allocation5], %s511
        %s513 = sand.u32 %s313, 1
        %s514 = smul.addr %s513, 8
        %s515 = scalar_lea.vmem [#allocation9], %s514
        %p516 = scmp.lt.s32.totalorder %s31, 1
        %s517 = scalar_select %p516, %s31, 1
        %p518 = scmp.lt.s32.totalorder %s32, 1
        %s519 = scalar_select %p518, %s32, 1
        %s520 = smul.addr %s517, 2
        %s521 = sadd.s32 %s519, %s520
        %s522 = smul.addr %s521, 4
        %s523 = scalar_lea.vmem %s0, %s522
        %s524 = ssub.s32 %s32, 1
        %p525 = scmp.gt.s32.totalorder %s524, 0
        %s526 = scalar_select %p525, %s524, 0
        %p527 = scmp.lt.s32.totalorder %s31, 1
        %s528 = scalar_select %p527, %s31, 1
        %p529 = scmp.lt.s32.totalorder %s526, 1
        %s530 = scalar_select %p529, %s526, 1
        %s531 = smul.addr %s528, 2
        %s532 = sadd.s32 %s530, %s531
        %s533 = smul.addr %s532, 4
        %s534 = scalar_lea.vmem %s1, %s533
        %s535 = ssub.s32 %s32, 1
        %p536 = scmp.gt.s32.totalorder %s535, 0
        %s537 = scalar_select %p536, %s535, 0
        %s538 = sadd.s32 %s32, 1
        %p539 = scmp.lt.s32.totalorder %s538, 1
        %s540 = scalar_select %p539, %s538, 1
        %p541 = scmp.lt.s32.totalorder %s31, 1
        %s542 = scalar_select %p541, %s31, 1
        %p543 = scmp.lt.s32.totalorder %s540, 1
        %s544 = scalar_select %p543, %s540, 1
        %s545 = smul.addr %s542, 2
        %s546 = sadd.s32 %s544, %s545
        %s547 = smul.addr %s546, 4
        %s548 = scalar_lea.vmem %s2, %s547
        %s549 = sadd.s32 %s32, 1
        %p550 = scmp.lt.s32.totalorder %s549, 1
        %s551 = scalar_select %p550, %s549, 1
        %v552 = vld [vmem:[#allocation3] sm:$0xf]
        %v553 = vld [vmem:[%s523] sm:$0xf]
        %555 = vset.pattern.permute.xlu0 9
        %556 = vperm.xlu0 %555, %v552
        %v557 = vpop.permute.xlu0 %556
        %v559 = vmul.f32 %v553, %v557
        %560 = vset.pattern.permute.xlu0 10
        %561 = vperm.xlu0 %560, %v552
        %v562 = vpop.permute.xlu0 %561
        %v564 = vadd.f32 %v559, %v562
        %566 = vrot.lane.b32.xlu0 %v564, 17
        %v567 = vpop.permute.xlu0 %566
        %v568 = vrot.slane %v567, 4
        %vm569 = vcmask 138240
        %v570 = vsel %vm569, %v568, %v567
        %vm572 = vcmask 1043592
        %vm573 = vcmask 138244
        %vm574 = vmor %vm573, %vm572
        %575 = vst.msk [vmem:[#allocation2] sm:$0xff] %vm574, %v570
        %v576 = vld [vmem:[%s534] sm:$0xf]
        %v577 = vmul.f32 %v576, %v557
        %v578 = vadd.f32 %v577, %v562
        %p579 = scmp.gt.s32.totalorder %s32, 0
        %s580 = scalar_select %p579, 1, 0
        %s581 = scvt.s32.f32 %s580
        %v582 = vstv %s581
        %v583 = vmul.f32 %v578, %v582
        %v584 = vld [vmem:[%s548] sm:$0xf]
        %v585 = vmul.f32 %v584, %v557
        %v586 = vadd.f32 %v585, %v562
        %p587 = scmp.lt.s32.totalorder %s32, 1
        %s588 = scalar_select %p587, 1, 0
        %s589 = scvt.s32.f32 %s588
        %v590 = vstv %s589
        %v591 = vmul.f32 %v586, %v590
        %vm592 = vcmask 3072
        %593 = vst.msk [vmem:[#allocation2] sm:$0xf] %vm592, 0.0
        %595 = vrot.lane.b32.xlu0 %v583, 17
        %v596 = vpop.permute.xlu0 %595
        %vm598 = vcmask 134152
        %599 = vst.msk [vmem:[#allocation2] sm:$0xf] %vm598, %v596
        %601 = vrot.lane.b32.xlu0 %v591, 17
        %v602 = vpop.permute.xlu0 %601
        %vm604 = vcmask 265352
        %605 = vst.msk [vmem:[#allocation2 + $0x4] sm:$0xf] %vm604, %v602
        %vm606 = vcmask 273672
        %607 = vst.msk [vmem:[#allocation2 + $0x4] sm:$0xf] %vm606, 0.0
        %v608 = vld [vmem:[#allocation2] sm:$0xf]
        %609 = vset.pattern.permute.xlu0 0
        %610 = vperm.xlu0 %609, %v552
        %v611 = vpop.permute.xlu0 %610
        %v613 = vmul.f32 %v608, %v611
        %v614 = vld [vmem:[#allocation2] sm:$0xff]
        %615 = vset.pattern.permute.xlu0 3
        %616 = vperm.xlu0 %615, %v552
        %v617 = vpop.permute.xlu0 %616
        %v619 = vmul.f32 %v614, %v617
        %621 = vrot.lane.b32.xlu0 %v619, 112
        %v622 = vpop.permute.xlu0 %621
        %v623 = vrot.slane %v622, 4
        %vm624 = vcmask 916480
        %v625 = vsel %vm624, %v622, %v623
        %v627 = vadd.f32 %v613, %v625
        %628 = vset.pattern.permute.xlu0 6
        %629 = vperm.xlu0 %628, %v552
        %v630 = vpop.permute.xlu0 %629
        %v632 = vmul.f32 %v614, %v630
        %634 = vrot.lane.b32.xlu0 %v632, 96
        %v635 = vpop.permute.xlu0 %634
        %v636 = vrot.slane %v635, 4
        %vm637 = vcmask 785408
        %v638 = vsel %vm637, %v635, %v636
        %v640 = vadd.f32 %v627, %v638
        %641 = vset.pattern.permute.xlu0 1
        %642 = vperm.xlu0 %641, %v552
        %v643 = vpop.permute.xlu0 %642
        %v645 = vmul.f32 %v614, %v643
        %646 = vset.pattern.permute.xlu0 4
        %647 = vperm.xlu0 %646, %v552
        %v648 = vpop.permute.xlu0 %647
        %v650 = vmul.f32 %v564, %v648
        %652 = vrot.lane.b32.xlu0 %v650, 1
        %v653 = vpop.permute.xlu0 %652
        %v654 = vrot.slane %v653, 4
        %vm655 = vcmask 7168
        %v656 = vsel %vm655, %v654, %v653
        %v658 = vadd.f32 %v645, %v656
        %v659 = vld [vmem:[#allocation2] sm:$0xff]
        %660 = vset.pattern.permute.xlu0 7
        %661 = vperm.xlu0 %660, %v552
        %v662 = vpop.permute.xlu0 %661
        %v664 = vmul.f32 %v659, %v662
        %666 = vrot.lane.b32.xlu0 %v664, 96
        %v667 = vpop.permute.xlu0 %666
        %v668 = vrot.slane %v667, 4
        %v669 = vsel %vm637, %v667, %v668
        %v671 = vadd.f32 %v658, %v669
        %672 = vset.pattern.permute.xlu0 2
        %673 = vperm.xlu0 %672, %v552
        %v674 = vpop.permute.xlu0 %673
        %v676 = vmul.f32 %v659, %v674
        %677 = vset.pattern.permute.xlu0 5
        %678 = vperm.xlu0 %677, %v552
        %v679 = vpop.permute.xlu0 %678
        %v681 = vmul.f32 %v659, %v679
        %683 = vrot.lane.b32.xlu0 %v681, 112
        %v684 = vpop.permute.xlu0 %683
        %v685 = vrot.slane %v684, 4
        %v686 = vsel %vm624, %v684, %v685
        %v688 = vadd.f32 %v676, %v686
        %689 = vset.pattern.permute.xlu0 8
        %690 = vperm.xlu0 %689, %v552
        %v691 = vpop.permute.xlu0 %690
        %v693 = vmul.f32 %v659, %v691
        %695 = vrot.lane.b32.xlu0 %v693, 96
        %v696 = vpop.permute.xlu0 %695
        %v697 = vrot.slane %v696, 4
        %v698 = vsel %vm637, %v696, %v697
        %v700 = vadd.f32 %v688, %v698
        %v701 = vld [vmem:[#allocation6] sm:$0x1]
        %v702 = vld [vmem:[#allocation6 + $0x1] sm:$0x1]
        %v703 = vlaneseq
        %v704 = vshrl.u32 %v703, 7
        %v705 = vsub.s32 0, %v704
        %v706 = vrot.slane %v701, %v705
        %v707 = vmul.f32 %v640, %v706
        %709 = vrot.lane.b32.xlu0 %v671, 127
        %v710 = vpop.permute.xlu0 %709
        %v711 = vrot.slane %v710, 4
        %vm712 = vcmask 1039360
        %v713 = vsel %vm712, %v710, %v711
        %v715 = vadd.f32 %v707, %v713
        %v716 = vlaneseq
        %v717 = vshrl.u32 %v716, 7
        %v718 = vsub.s32 0, %v717
        %v719 = vrot.slane %v702, %v718
        %721 = vrot.lane.b32.xlu0 %v719, 2
        %v722 = vpop.permute.xlu0 %721
        %v723 = vrot.slane %v722, 4
        %vm724 = vcmask 15360
        %v725 = vsel %vm724, %v723, %v722
        %v727 = vmul.f32 %v700, %v725
        %729 = vrot.lane.b32.xlu0 %v727, 126
        %v730 = vpop.permute.xlu0 %729
        %v731 = vrot.slane %v730, 4
        %vm732 = vcmask 1031168
        %v733 = vsel %vm732, %v730, %v731
        %v735 = vadd.f32 %v715, %v733
        %736 = vset.pattern.permute.xlu0 11
        %737 = vperm.xlu0 %736, %v552
        %v738 = vpop.permute.xlu0 %737
        %v740 = vadd.f32 %v735, %v738
        %v741 = vld [vmem:[#allocation8] sm:$0xf]
        %v742 = vld [vmem:[%s6] sm:$0xf]
        %744 = vset.pattern.permute.xlu0 0
        %745 = vperm.xlu0 %744, %v742
        %v746 = vpop.permute.xlu0 %745
        %vm748 = vcmask 31744
        %v750 = vsel %vm748, %v741, 0
        %vm752 = vcmask 1043456
        %v754 = vsel %vm752, %v553, 0
        %756 = vmatprep.subr.mxu0 0.0
        %757 = vmatpush1.msra.mxu0 0.0
        %758 = vmatprep.subr.mxu0 0.0
        %759 = vmatpush1.msra.mxu0 0.0
        %760 = vmatprep.subr.mxu0 0.0
        %761 = vmatpush1.msra.mxu0 0.0
        %762 = vmatprep.subr.mxu0 0.0
        %763 = vmatpush1.msra.mxu0 0.0
        %764 = vmatprep.subr.mxu0 0.0
        %765 = vmatpush1.msra.mxu0 0.0
        %766 = vmatprep.subr.mxu0 0.0
        %767 = vmatpush1.msra.mxu0 0.0
        %768 = vmatprep.subr.mxu0 0.0
        %769 = vmatpush1.msra.mxu0 0.0
        %770 = vmatprep.subr.mxu0 0.0
        %771 = vmatpush1.msra.mxu0 0.0
        %772 = vmatprep.subr.mxu0 0.0
        %773 = vmatpush1.msra.mxu0 0.0
        %774 = vmatprep.subr.mxu0 0.0
        %775 = vmatpush1.msra.mxu0 0.0
        %776 = vmatprep.subr.mxu0 0.0
        %777 = vmatpush1.msra.mxu0 0.0
        %778 = vmatprep.subr.mxu0 0.0
        %779 = vmatpush1.msra.mxu0 0.0
        %780 = vmatprep.subr.mxu0 0.0
        %781 = vmatpush1.msra.mxu0 0.0
        %782 = vmatprep.subr.mxu0 0.0
        %783 = vmatpush1.msra.mxu0 0.0
        %784 = vmatprep.subr.mxu0 0.0
        %785 = vmatpush1.msra.mxu0 0.0
        %786 = vmatprep.subr.mxu0 0.0
        %787 = vmatpush1.msra.mxu0 %v754
        %788 = vmatprep.subr.mxu0 0.0
        %789 = vmatpush2.msra.mxu0 0.0
        %790 = vmatprep.subr.mxu0 0.0
        %791 = vmatpush2.msra.mxu0 0.0
        %792 = vmatprep.subr.mxu0 0.0
        %793 = vmatpush2.msra.mxu0 0.0
        %794 = vmatprep.subr.mxu0 0.0
        %795 = vmatpush2.msra.mxu0 0.0
        %796 = vmatprep.subr.mxu0 0.0
        %797 = vmatpush2.msra.mxu0 0.0
        %798 = vmatprep.subr.mxu0 0.0
        %799 = vmatpush2.msra.mxu0 0.0
        %800 = vmatprep.subr.mxu0 0.0
        %801 = vmatpush2.msra.mxu0 0.0
        %802 = vmatprep.subr.mxu0 0.0
        %803 = vmatpush2.msra.mxu0 0.0
        %804 = vmatprep.subr.mxu0 0.0
        %805 = vmatpush2.msra.mxu0 0.0
        %806 = vmatprep.subr.mxu0 0.0
        %807 = vmatpush2.msra.mxu0 0.0
        %808 = vmatprep.subr.mxu0 0.0
        %809 = vmatpush2.msra.mxu0 0.0
        %810 = vmatprep.subr.mxu0 0.0
        %811 = vmatpush2.msra.mxu0 0.0
        %812 = vmatprep.subr.mxu0 0.0
        %813 = vmatpush2.msra.mxu0 0.0
        %814 = vmatprep.subr.mxu0 0.0
        %815 = vmatpush2.msra.mxu0 0.0
        %816 = vmatprep.subr.mxu0 0.0
        %817 = vmatpush2.msra.mxu0 0.0
        %818 = vmatprep.subr.mxu0 0.0
        %819 = vmatpush2.msra.mxu0 0.0
        %820 = vmatprep.mubr.f32.mxu0 0.0
        %821 = vmatmul.mubr.f32.gmra.mxu0 %v750
        %v822 = vpop.f32.mrf.mxu0
        %v823 = vadd.f32 %v746, %v822
        %v824 = vpop.f32.mrf.mxu0
        %825 = vdwg.mxu0
        %v826 = vsub.f32 0.0, %v823
        %v827 = vmul.f32 %v826, 1.442695
        %v828 = vpow.pop %v827
        %v829 = vadd.f32 %v828, 1.0
        %v830 = vrcp.pop %v829
        %v831 = vmul.f32 %v740, %v830
        %v832 = vadd.f32 %v831, %v553
        %v833 = vld [vmem:[%s7] sm:$0xff]
        %v834 = vld [vmem:[%s7 + $0x8] sm:$0xff]
        %v835 = vld [vmem:[%s8] sm:$0xff]
        %v836 = vld [vmem:[%s8 + $0x8] sm:$0xff]
        %838 = vset.pattern.permute.xlu0 0
        %839 = vperm.xlu0 %838, %v835
        %v840 = vpop.permute.xlu0 %839
        %843 = vset.pattern.permute.xlu0 0
        %844 = vperm.xlu0 %843, %v836
        %v845 = vpop.permute.xlu0 %844
        %v848 = vsel %vm748, %v833, 0
        %v851 = vsel %vm748, %v834, 0
        %v854 = vsel %vm752, %v832, 0
        %856 = vmatprep.subr.mxu0 0.0
        %857 = vmatpush1.msra.mxu0 0.0
        %858 = vmatprep.subr.mxu0 0.0
        %859 = vmatpush1.msra.mxu0 0.0
        %860 = vmatprep.subr.mxu0 0.0
        %861 = vmatpush1.msra.mxu0 0.0
        %862 = vmatprep.subr.mxu0 0.0
        %863 = vmatpush1.msra.mxu0 0.0
        %864 = vmatprep.subr.mxu0 0.0
        %865 = vmatpush1.msra.mxu0 0.0
        %866 = vmatprep.subr.mxu0 0.0
        %867 = vmatpush1.msra.mxu0 0.0
        %868 = vmatprep.subr.mxu0 0.0
        %869 = vmatpush1.msra.mxu0 0.0
        %870 = vmatprep.subr.mxu0 0.0
        %871 = vmatpush1.msra.mxu0 0.0
        %872 = vmatprep.subr.mxu0 0.0
        %873 = vmatpush1.msra.mxu0 0.0
        %874 = vmatprep.subr.mxu0 0.0
        %875 = vmatpush1.msra.mxu0 0.0
        %876 = vmatprep.subr.mxu0 0.0
        %877 = vmatpush1.msra.mxu0 0.0
        %878 = vmatprep.subr.mxu0 0.0
        %879 = vmatpush1.msra.mxu0 0.0
        %880 = vmatprep.subr.mxu0 0.0
        %881 = vmatpush1.msra.mxu0 0.0
        %882 = vmatprep.subr.mxu0 0.0
        %883 = vmatpush1.msra.mxu0 0.0
        %884 = vmatprep.subr.mxu0 0.0
        %885 = vmatpush1.msra.mxu0 0.0
        %886 = vmatprep.subr.mxu0 0.0
        %887 = vmatpush1.msra.mxu0 %v854
        %888 = vmatprep.subr.mxu0 0.0
        %889 = vmatpush2.msra.mxu0 0.0
        %890 = vmatprep.subr.mxu0 0.0
        %891 = vmatpush2.msra.mxu0 0.0
        %892 = vmatprep.subr.mxu0 0.0
        %893 = vmatpush2.msra.mxu0 0.0
        %894 = vmatprep.subr.mxu0 0.0
        %895 = vmatpush2.msra.mxu0 0.0
        %896 = vmatprep.subr.mxu0 0.0
        %897 = vmatpush2.msra.mxu0 0.0
        %898 = vmatprep.subr.mxu0 0.0
        %899 = vmatpush2.msra.mxu0 0.0
        %900 = vmatprep.subr.mxu0 0.0
        %901 = vmatpush2.msra.mxu0 0.0
        %902 = vmatprep.subr.mxu0 0.0
        %903 = vmatpush2.msra.mxu0 0.0
        %904 = vmatprep.subr.mxu0 0.0
        %905 = vmatpush2.msra.mxu0 0.0
        %906 = vmatprep.subr.mxu0 0.0
        %907 = vmatpush2.msra.mxu0 0.0
        %908 = vmatprep.subr.mxu0 0.0
        %909 = vmatpush2.msra.mxu0 0.0
        %910 = vmatprep.subr.mxu0 0.0
        %911 = vmatpush2.msra.mxu0 0.0
        %912 = vmatprep.subr.mxu0 0.0
        %913 = vmatpush2.msra.mxu0 0.0
        %914 = vmatprep.subr.mxu0 0.0
        %915 = vmatpush2.msra.mxu0 0.0
        %916 = vmatprep.subr.mxu0 0.0
        %917 = vmatpush2.msra.mxu0 0.0
        %918 = vmatprep.subr.mxu0 0.0
        %919 = vmatpush2.msra.mxu0 0.0
        %920 = vmatprep.mubr.f32.mxu0 0.0
        %921 = vmatmul.mubr.f32.gmra.mxu0 %v848
        %v922 = vpop.f32.mrf.mxu0
        %v923 = vadd.f32 %v840, %v922
        %v924 = vpop.f32.mrf.mxu0
        %925 = vmatprep.mubr.f32.mxu0 0.0
        %926 = vmatmul.mubr.f32.gmra.mxu0 %v851
        %v927 = vpop.f32.mrf.mxu0
        %v928 = vadd.f32 %v845, %v927
        %v929 = vpop.f32.mrf.mxu0
        %930 = vdwg.mxu0
        %v931 = vmul.f32 %v923, 0.5
        %v932 = vmul.f32 %v923, 0.044715
        %v933 = vmul.f32 %v932, %v923
        %v934 = vmul.f32 %v933, %v923
        %v935 = vadd.f32 %v923, %v934
        %v936 = vmul.f32 %v935, 0.7978846
        %v937 = vtanh.pop %v936
        %v938 = vadd.f32 %v937, 1.0
        %v939 = vmul.f32 %v931, %v938
        %v940 = vld [vmem:[%s9] sm:$0xff]
        %v941 = vld [vmem:[%s10] sm:$0xff]
        %943 = vset.pattern.permute.xlu0 0
        %944 = vperm.xlu0 %943, %v941
        %v945 = vpop.permute.xlu0 %944
        %vm947 = vcmask 64512
        %v949 = vsel %vm947, %v940, 0
        %951 = vmatprep.subr.mxu0 0.0
        %952 = vmatpush1.msra.mxu0 0.0
        %953 = vmatprep.subr.mxu0 0.0
        %954 = vmatpush1.msra.mxu0 0.0
        %955 = vmatprep.subr.mxu0 0.0
        %956 = vmatpush1.msra.mxu0 0.0
        %957 = vmatprep.subr.mxu0 0.0
        %958 = vmatpush1.msra.mxu0 0.0
        %959 = vmatprep.subr.mxu0 0.0
        %960 = vmatpush1.msra.mxu0 0.0
        %961 = vmatprep.subr.mxu0 0.0
        %962 = vmatpush1.msra.mxu0 0.0
        %963 = vmatprep.subr.mxu0 0.0
        %964 = vmatpush1.msra.mxu0 0.0
        %965 = vmatprep.subr.mxu0 0.0
        %966 = vmatpush1.msra.mxu0 0.0
        %967 = vmatprep.subr.mxu0 0.0
        %968 = vmatpush1.msra.mxu0 0.0
        %969 = vmatprep.subr.mxu0 0.0
        %970 = vmatpush1.msra.mxu0 0.0
        %971 = vmatprep.subr.mxu0 0.0
        %972 = vmatpush1.msra.mxu0 0.0
        %973 = vmatprep.subr.mxu0 0.0
        %974 = vmatpush1.msra.mxu0 0.0
        %975 = vmatprep.subr.mxu0 0.0
        %976 = vmatpush1.msra.mxu0 0.0
        %977 = vmatprep.subr.mxu0 0.0
        %978 = vmatpush1.msra.mxu0 0.0
        %979 = vmatprep.subr.mxu0 0.0
        %980 = vmatpush1.msra.mxu0 0.0
        %981 = vmatprep.subr.mxu0 0.0
        %982 = vmatpush1.msra.mxu0 %v939
        %983 = vmatprep.subr.mxu0 0.0
        %984 = vmatpush2.msra.mxu0 0.0
        %985 = vmatprep.subr.mxu0 0.0
        %986 = vmatpush2.msra.mxu0 0.0
        %987 = vmatprep.subr.mxu0 0.0
        %988 = vmatpush2.msra.mxu0 0.0
        %989 = vmatprep.subr.mxu0 0.0
        %990 = vmatpush2.msra.mxu0 0.0
        %991 = vmatprep.subr.mxu0 0.0
        %992 = vmatpush2.msra.mxu0 0.0
        %993 = vmatprep.subr.mxu0 0.0
        %994 = vmatpush2.msra.mxu0 0.0
        %995 = vmatprep.subr.mxu0 0.0
        %996 = vmatpush2.msra.mxu0 0.0
        %997 = vmatprep.subr.mxu0 0.0
        %998 = vmatpush2.msra.mxu0 0.0
        %999 = vmatprep.subr.mxu0 0.0
        %1000 = vmatpush2.msra.mxu0 0.0
        %1001 = vmatprep.subr.mxu0 0.0
        %1002 = vmatpush2.msra.mxu0 0.0
        %1003 = vmatprep.subr.mxu0 0.0
        %1004 = vmatpush2.msra.mxu0 0.0
        %1005 = vmatprep.subr.mxu0 0.0
        %1006 = vmatpush2.msra.mxu0 0.0
        %1007 = vmatprep.subr.mxu0 0.0
        %1008 = vmatpush2.msra.mxu0 0.0
        %1009 = vmatprep.subr.mxu0 0.0
        %1010 = vmatpush2.msra.mxu0 0.0
        %1011 = vmatprep.subr.mxu0 0.0
        %1012 = vmatpush2.msra.mxu0 0.0
        %1013 = vmatprep.subr.mxu0 0.0
        %1014 = vmatpush2.msra.mxu0 0.0
        %1015 = vmatprep.mubr.f32.mxu0 0.0
        %1016 = vmatmul.mubr.f32.gmra.mxu0 %v949
        %v1017 = vpop.f32.mrf.mxu0
        %v1018 = vadd.f32 %v945, %v1017
        %v1019 = vpop.f32.mrf.mxu0
        %1020 = vdwg.mxu0
        %v1021 = vadd.f32 %v1018, %v928
        %1022 = vst [vmem:[%s515] sm:$0xff] %v1021
        %s1023 = sand.u32 %s313, 1
        %s1024 = scalar_lea.sflag [#allocation5], %s1023
        %s1025 = sand.u32 %s313, 1
        %s1026 = smul.addr %s1025, 8
        %s1027 = scalar_lea.vmem [#allocation9], %s1026
        // Predicated region
        $region77: #{tpu_custom_call.1} parent=63 // pred_check
          %p1028 = pneg %p323
        $region78: #{tpu_custom_call.1} parent=63 // pred_check_branch
          %1030 = sbr.rel (%p1028) target = $region80
        $region79: #{tpu_custom_call.1} parent=63 // pred_region
          %s1032 = ssub.s32 128, 128
          %1033 = vsyncadd %s1024, %s1032
          %s1034 = smul.addr %s31, 2
          %s1035 = sadd.s32 %s32, %s1034
          %s1036 = smul.addr %s1035, 128
          %s1037 = scalar_lea.hbm %s11, %s1036
          %s1039 = sshll.u32 %s1027, 4
          %s1040 = int_to_ptr.vmem [resolvable:$true] %s1039
          %1042 = dma.vmem_to_hbm [thread:$0]  %s1040, 128, %s1037, %s1024
        $region80: #{tpu_custom_call.1} parent=63 // pred_fallthru
          _
      $region64: #{tpu_custom_call.1} parent=5 // pred_fallthru
        _
      %p1043 = scmp.le.s32.totalorder 2, %s22
      // Predicated region
      $region81: #{tpu_custom_call.1} parent=5 // pred_check
        %p1044 = pneg %p1043
      $region82: #{tpu_custom_call.1} parent=5 // pred_check_branch
        %1046 = sbr.rel (%p1044) target = $region84
      $region83: #{tpu_custom_call.1} parent=5 // pred_region
        %s1047 = ssub.s32 %s22, 2
        // Predicated region
        $region85: #{tpu_custom_call.1} parent=83 // pred_check
          %p1048 = pneg %p329
        $region86: #{tpu_custom_call.1} parent=83 // pred_check_branch
          %1050 = sbr.rel (%p1048) target = $region88
        $region87: #{tpu_custom_call.1} parent=83 // pred_region
          %s1051 = sand.u32 %s314, 1
          %s1052 = scalar_lea.sflag [#allocation5], %s1051
          %s1053 = sand.u32 %s314, 1
          %s1054 = smul.addr %s1053, 8
          %s1055 = scalar_lea.vmem [#allocation9], %s1054
          %1056 = dma.done %s1052, 128
        $region88: #{tpu_custom_call.1} parent=83 // pred_fallthru
          _
      $region84: #{tpu_custom_call.1} parent=5 // pred_fallthru
        _
    $region6: #{tpu_custom_call.1} parent=1 // loop_footer
      %s26 = sadd.s32 1, %s22
    $region7: #{tpu_custom_call.1} parent=1 // loop_footer_branch
      %21 = sbr.rel target = $region3
    $region8: #{tpu_custom_call.1} parent=1 // loop_exit
      _
    %1057 = vsyncpa [#allocation4], 1
    %s1058 = scalar_lea.sflag [#allocation4], 1
    %1059 = vsyncpa %s1058, 1
    %1060 = vsyncpa [#allocation7], 1
    %1061 = vsyncpa [#allocation5], 1
    %s1062 = scalar_lea.sflag [#allocation5], 1
    %1063 = vsyncpa %s1062, 1

</llo_original>
